<compile_context>
chip_gen: v7x
topology: tpu7x:2x2x1
jax: 0.10.0
libtpu: 0.0.40
codegen_flags: <defaults>
</compile_context>

<pallas_src>
import jax
import jax.numpy as jnp
from jax.experimental import pallas as pl
from jax.experimental.pallas import tpu as pltpu


def hybrid_kernel(
    x_kg_ref, x_sen_ref,
    kw1_ref, kb1_ref, kw2f_ref,
    sw1_ref, sb1_ref, sw2f_ref,
    fb1_ref, fw2r_ref, fb2_ref,
    out_ref,
):
    f32 = jnp.float32
    bf16 = jnp.bfloat16

    # KG branch: Linear(+folded BN) -> ReLU -> Dropout(id) -> Linear, where the
    # second Linear already has fw1a composed into it (kw2f).
    hk = jnp.dot(x_kg_ref[...], kw1_ref[...], preferred_element_type=f32)
    hk = jnp.maximum(hk + kb1_ref[...], 0.0)
    t = jnp.dot(hk.astype(bf16), kw2f_ref[...], preferred_element_type=f32)

    # Sentence branch (sw2f has fw1b composed into it).
    hs = jnp.dot(x_sen_ref[...], sw1_ref[...], preferred_element_type=f32)
    hs = jnp.maximum(hs + sb1_ref[...], 0.0)
    s = jnp.dot(hs.astype(bf16), sw2f_ref[...], preferred_element_type=f32)

    # Fusion layer: concat([t, s], 1) @ fw1 == t @ fw1a + s @ fw1b, which was
    # pre-composed into kw2f / sw2f, so only the add + bias + ReLU remain.
    h = jnp.maximum(t + s + fb1_ref[...], 0.0)

    # (width, 1) output layer as a lane reduction (XLU) instead of an N=1 MXU
    # pass; exact sigmoid on the tiny (tb, 1) result.
    logits = jnp.sum(h * fw2r_ref[...], axis=-1, keepdims=True) + fb2_ref[...]
    out_ref[...] = 1.0 / (1.0 + jnp.exp(-logits))
    # TODO(synk): output stays (tb, 1) (masked vst) — bytes are negligible and a
    #             128-wide slab would add 128x output HBM traffic.


def _round_up(x, m):
    return -(-x // m) * m


def _default_tile_b():
    # 2048 rows on 128 MiB-VMEM chips (v5e/v6e), 1024 on v7x (64 MiB/TC).
    try:
        vmem = pltpu.get_tpu_info().vmem_capacity_bytes
    except Exception:
        vmem = 64 << 20
    return 2048 if vmem >= (100 << 20) else 1024


def hybrid_forward_pallas(x_kg, x_sen, params, tile_b=None):
    bf16 = jnp.bfloat16
    if tile_b is None:
        tile_b = _default_tile_b()

    B = x_kg.shape[0]
    kg_k = params["kw1"].shape[0]        # KG features, zero-padded (30 -> 32)
    sen_k = params["sw1"].shape[0]       # 2304
    width = params["kw2f"].shape[0]      # 256

    # Zero-pad the KG features to kw1's padded contraction dim; bf16 inputs.
    if x_kg.shape[1] != kg_k:
        x_kg = jnp.pad(x_kg, ((0, 0), (0, kg_k - x_kg.shape[1])))
    x_kg = x_kg.astype(bf16)
    x_sen = x_sen.astype(bf16)

    # Batch tiling: multiples of 8 sublanes; cap the tile so the grid has >=2
    # steps whenever the batch allows (keeps both v7x TensorCores busy).
    Bp = _round_up(B, 8)
    tb = min(tile_b, Bp)
    if Bp >= 16:
        tb = min(tb, _round_up(pl.cdiv(Bp, 2), 8))
    tb = max(8, _round_up(tb, 8))
    Bp = _round_up(Bp, tb)
    if Bp != B:
        x_kg = jnp.pad(x_kg, ((0, Bp - B), (0, 0)))
        x_sen = jnp.pad(x_sen, ((0, Bp - B), (0, 0)))
    grid = (Bp // tb,)

    order = ("kw1", "kb1", "kw2f", "sw1", "sb1", "sw2f", "fb1", "fw2r", "fb2")
    weights = [params[k] for k in order]

    def batch_spec(ncols):
        return pl.BlockSpec((tb, ncols), lambda i: (i, 0))

    def resident_spec(arr):
        # Same block index every grid step -> weights stay resident in VMEM.
        return pl.BlockSpec(arr.shape, lambda i: (0,) * arr.ndim)

    in_specs = ([batch_spec(kg_k), batch_spec(sen_k)]
                + [resident_spec(w) for w in weights])
    out_specs = batch_spec(1)
    # TODO(synk): weight BlockSpecs could use pipeline_mode=pl.Buffered(1) to
    #             reclaim ~1.5 MiB of never-refilled double buffers.

    # VMEM budget from the actual footprint (bf16 inputs + folded weights,
    # double-buffered, plus f32 compute temporaries), with headroom, capped
    # below v7x's 64 MiB per-core VMEM.
    param_bytes = sum(int(p.size) * p.dtype.itemsize for p in weights)
    act_in_bytes = tb * kg_k * 2 + tb * sen_k * 2     # bf16 input tiles
    out_bytes = tb * 128 * 4                          # lane-padded f32 out tile
    scratch_bytes = 6 * tb * width * 4                # f32 temporaries
    est = 2 * (param_bytes + act_in_bytes + out_bytes) + scratch_bytes
    vmem_limit = int(min(max(est * 3 // 2, 24 << 20), 48 << 20))

    flops = 2 * Bp * (kg_k * width + sen_k * width + 2 * width * width) \
        + 2 * Bp * width
    bytes_accessed = Bp * (kg_k + sen_k) * 2 + param_bytes + Bp * 4

    out = pl.pallas_call(
        hybrid_kernel,
        out_shape=jax.ShapeDtypeStruct((Bp, 1), jnp.float32),
        grid=grid,
        in_specs=in_specs,
        out_specs=out_specs,
        compiler_params=pltpu.CompilerParams(
            dimension_semantics=("parallel",),  # shard batch tiles across TCs
            vmem_limit_bytes=vmem_limit,
        ),
        cost_estimate=pl.CostEstimate(
            flops=flops, transcendentals=Bp, bytes_accessed=bytes_accessed),
    )(x_kg, x_sen, *weights)
    return out[:B]


def _linear_init(key, fan_in, fan_out):
    kw, kb = jax.random.split(key)
    bound = 1.0 / (fan_in ** 0.5)
    w = jax.random.uniform(kw, (fan_in, fan_out), jnp.float32, -bound, bound)
    b = jax.random.uniform(kb, (1, fan_out), jnp.float32, -bound, bound)
    return w, b


def _bn_folded(width, eps=1e-5):
    # PyTorch BatchNorm1d defaults: gamma=1, beta=0, running_mean=0, running_var=1.
    gamma = jnp.ones((1, width), jnp.float32)
    beta = jnp.zeros((1, width), jnp.float32)
    running_mean = jnp.zeros((1, width), jnp.float32)
    running_var = jnp.ones((1, width), jnp.float32)
    scale = gamma / jnp.sqrt(running_var + eps)
    shift = beta - running_mean * scale
    return scale, shift


def _fold_bn(w1, b1, scale, shift):
    # Linear -> BatchNorm(eval)  ==  Linear with w1*scale, b1*scale + shift.
    return w1 * scale, b1 * scale + shift


def make_params(key, emb_dim, emb_dim_rel, sentence_dim, width):
    keys = jax.random.split(key, 6)
    kg_in = emb_dim * 2 + emb_dim_rel
    kg_in_pad = _round_up(kg_in, 8)          # 30 -> 32

    kw1, kb1 = _linear_init(keys[0], kg_in, width)
    kw2, kb2 = _linear_init(keys[1], width, width)
    kw1, kb1 = _fold_bn(kw1, kb1, *_bn_folded(width))
    kw1 = jnp.pad(kw1, ((0, kg_in_pad - kg_in), (0, 0)))

    sw1, sb1 = _linear_init(keys[2], sentence_dim, width)
    sw2, sb2 = _linear_init(keys[3], width, width)
    sw1, sb1 = _fold_bn(sw1, sb1, *_bn_folded(width))

    fw1, fb1 = _linear_init(keys[4], width * 2, width)
    fw2, fb2 = _linear_init(keys[5], width, 1)
    fw1, fb1 = _fold_bn(fw1, fb1, *_bn_folded(width))

    # Fold the branch second Linears into the fusion layer (no nonlinearity in
    # between; dropout is identity in eval).  Compose in f32, then cast bf16.
    fw1a, fw1b = fw1[:width, :], fw1[width:, :]
    kw2f = kw2 @ fw1a
    sw2f = sw2 @ fw1b
    fb1f = kb2 @ fw1a + sb2 @ fw1b + fb1

    bf16 = jnp.bfloat16
    return dict(
        kw1=kw1.astype(bf16), kb1=kb1, kw2f=kw2f.astype(bf16),
        sw1=sw1.astype(bf16), sb1=sb1, sw2f=sw2f.astype(bf16),
        fb1=fb1f,
        fw2r=fw2.T,                # (1, width) f32 row for the lane reduction
        fb2=fb2,                   # (1, 1) f32
    )


def reference_forward(x_kg, x_sen, p):
    # Pure-JAX reference with the same folded/bf16 params and precision policy.
    f32 = jnp.float32
    bf16 = jnp.bfloat16
    kg_k = p["kw1"].shape[0]
    if x_kg.shape[1] != kg_k:
        x_kg = jnp.pad(x_kg, ((0, 0), (0, kg_k - x_kg.shape[1])))
    x_kg = x_kg.astype(bf16)
    x_sen = x_sen.astype(bf16)

    def dot(a, w):
        return jnp.dot(a, w, preferred_element_type=f32)

    hk = jnp.maximum(dot(x_kg, p["kw1"]) + p["kb1"], 0.0)
    t = dot(hk.astype(bf16), p["kw2f"])
    hs = jnp.maximum(dot(x_sen, p["sw1"]) + p["sb1"], 0.0)
    s = dot(hs.astype(bf16), p["sw2f"])
    h = jnp.maximum(t + s + p["fb1"], 0.0)
    logits = jnp.sum(h * p["fw2r"], axis=-1, keepdims=True) + p["fb2"]
    return 1.0 / (1.0 + jnp.exp(-logits))


if __name__ == "__main__":
    # Small synthetic configuration consistent with the module's __init__.
    emb_dim = 10                       # entity embedding dim
    emb_dim_rel = 10                   # relation embedding dim
    sentence_dim = 768 * 3             # 2304, hardcoded in the module
    width = int(25.6 * emb_dim)        # shallom_width = 256
    num_entities, num_relations, num_sentences = 16, 8, 32
    batch = 8

    root = jax.random.PRNGKey(0)
    k_ent, k_rel, k_sen, k_idx, k_par = jax.random.split(root, 5)

    ent_emb = jax.random.normal(k_ent, (num_entities, emb_dim), jnp.float32)
    rel_emb = jax.random.normal(k_rel, (num_relations, emb_dim_rel), jnp.float32)
    # Keep sentence embeddings in bf16 so the gather already yields bf16
    # (halves the dominant HBM stream into the kernel).
    sen_emb = jax.random.normal(
        k_sen, (num_sentences, sentence_dim), jnp.float32).astype(jnp.bfloat16)

    ki1, ki2, ki3, ki4 = jax.random.split(k_idx, 4)
    e1_idx = jax.random.randint(ki1, (batch,), 0, num_entities)
    rel_idx = jax.random.randint(ki2, (batch,), 0, num_relations)
    e2_idx = jax.random.randint(ki3, (batch,), 0, num_entities)
    sen_idx = jax.random.randint(ki4, (batch,), 0, num_sentences)

    # Glue: embedding lookups + concat (torch.cat([head, rel, tail], 1)).
    x_kg = jnp.concatenate(
        [jnp.take(ent_emb, e1_idx, axis=0),
         jnp.take(rel_emb, rel_idx, axis=0),
         jnp.take(ent_emb, e2_idx, axis=0)], axis=1)          # (B, 30) f32
    x_sen = jnp.take(sen_emb, sen_idx, axis=0)                # (B, 2304) bf16

    params = make_params(k_par, emb_dim, emb_dim_rel, sentence_dim, width)

    out = hybrid_forward_pallas(x_kg, x_sen, params)
    out = jax.block_until_ready(out)

    ref = reference_forward(x_kg, x_sen, params)
    assert out.shape == (batch, 1)
    assert bool(jnp.allclose(out, ref, atol=2e-3, rtol=2e-3))

    print("KERNEL_OK")
</pallas_src>

<mosaic_0001>
module attributes {stable_mosaic.version = 11 : i64} {
  func.func @hybrid_kernel(%arg0: i32, %arg1: memref<8x32xbf16, #tpu.memory_space<vmem>>, %arg2: memref<8x2304xbf16, #tpu.memory_space<vmem>>, %arg3: memref<32x256xbf16, #tpu.memory_space<vmem>>, %arg4: memref<1x256xf32, #tpu.memory_space<vmem>>, %arg5: memref<256x256xbf16, #tpu.memory_space<vmem>>, %arg6: memref<2304x256xbf16, #tpu.memory_space<vmem>>, %arg7: memref<1x256xf32, #tpu.memory_space<vmem>>, %arg8: memref<256x256xbf16, #tpu.memory_space<vmem>>, %arg9: memref<1x256xf32, #tpu.memory_space<vmem>>, %arg10: memref<1x256xf32, #tpu.memory_space<vmem>>, %arg11: memref<1x1xf32, #tpu.memory_space<vmem>>, %arg12: memref<8x1xf32, #tpu.memory_space<vmem>>) attributes {dimension_semantics = [#tpu.dimension_semantics<parallel>], iteration_bounds = array<i64: 1>, scalar_prefetch = 0 : i64, scratch_operands = 0 : i64, tpu.core_type = #tpu.core_type<tc>, window_params = [{transform_indices = @transform_0, window_bounds = array<i64: 8, 32>}, {transform_indices = @transform_1, window_bounds = array<i64: 8, 2304>}, {pipeline_mode = #tpu.pipeline_mode<synchronous>, transform_indices = @transform_2, window_bounds = array<i64: 32, 256>}, {pipeline_mode = #tpu.pipeline_mode<synchronous>, transform_indices = @transform_3, window_bounds = array<i64: 1, 256>}, {pipeline_mode = #tpu.pipeline_mode<synchronous>, transform_indices = @transform_4, window_bounds = array<i64: 256, 256>}, {pipeline_mode = #tpu.pipeline_mode<synchronous>, transform_indices = @transform_5, window_bounds = array<i64: 2304, 256>}, {pipeline_mode = #tpu.pipeline_mode<synchronous>, transform_indices = @transform_6, window_bounds = array<i64: 1, 256>}, {pipeline_mode = #tpu.pipeline_mode<synchronous>, transform_indices = @transform_7, window_bounds = array<i64: 256, 256>}, {pipeline_mode = #tpu.pipeline_mode<synchronous>, transform_indices = @transform_8, window_bounds = array<i64: 1, 256>}, {pipeline_mode = #tpu.pipeline_mode<synchronous>, transform_indices = @transform_9, window_bounds = array<i64: 1, 256>}, {pipeline_mode = #tpu.pipeline_mode<synchronous>, transform_indices = @transform_10, window_bounds = array<i64: 1, 1>}, {transform_indices = @transform_11, window_bounds = array<i64: 8, 1>}]} {
    %c0 = arith.constant 0 : index
    %c0_0 = arith.constant 0 : index
    %0 = vector.load %arg1[%c0, %c0_0] : memref<8x32xbf16, #tpu.memory_space<vmem>>, vector<8x32xbf16>
    %c0_1 = arith.constant 0 : index
    %c0_2 = arith.constant 0 : index
    %1 = vector.load %arg3[%c0_1, %c0_2] : memref<32x256xbf16, #tpu.memory_space<vmem>>, vector<32x256xbf16>
    %cst = arith.constant dense<0.000000e+00> : vector<8x256xf32>
    %2 = tpu.matmul %0, %1, %cst {dimension_numbers = #tpu.dot_dimension_numbers<[1], [0], [0], [1], [0, 0, 1, 1], [], []>} : vector<8x32xbf16>, vector<32x256xbf16>, vector<8x256xf32> -> vector<8x256xf32>
    %c0_3 = arith.constant 0 : index
    %c0_4 = arith.constant 0 : index
    %3 = vector.load %arg4[%c0_3, %c0_4] : memref<1x256xf32, #tpu.memory_space<vmem>>, vector<1x256xf32>
    %4 = vector.broadcast %3 : vector<1x256xf32> to vector<8x256xf32>
    %5 = arith.addf %2, %4 : vector<8x256xf32>
    %cst_5 = arith.constant 0.000000e+00 : f32
    %6 = vector.broadcast %cst_5 : f32 to vector<8x256xf32>
    %7 = arith.maximumf %5, %6 : vector<8x256xf32>
    %8 = arith.truncf %7 : vector<8x256xf32> to vector<8x256xbf16>
    %c0_6 = arith.constant 0 : index
    %c0_7 = arith.constant 0 : index
    %9 = vector.load %arg5[%c0_6, %c0_7] : memref<256x256xbf16, #tpu.memory_space<vmem>>, vector<256x256xbf16>
    %cst_8 = arith.constant dense<0.000000e+00> : vector<8x256xf32>
    %10 = tpu.matmul %8, %9, %cst_8 {dimension_numbers = #tpu.dot_dimension_numbers<[1], [0], [0], [1], [0, 0, 1, 1], [], []>} : vector<8x256xbf16>, vector<256x256xbf16>, vector<8x256xf32> -> vector<8x256xf32>
    %c0_9 = arith.constant 0 : index
    %c0_10 = arith.constant 0 : index
    %11 = vector.load %arg2[%c0_9, %c0_10] : memref<8x2304xbf16, #tpu.memory_space<vmem>>, vector<8x2304xbf16>
    %c0_11 = arith.constant 0 : index
    %c0_12 = arith.constant 0 : index
    %12 = vector.load %arg6[%c0_11, %c0_12] : memref<2304x256xbf16, #tpu.memory_space<vmem>>, vector<2304x256xbf16>
    %cst_13 = arith.constant dense<0.000000e+00> : vector<8x256xf32>
    %13 = tpu.matmul %11, %12, %cst_13 {dimension_numbers = #tpu.dot_dimension_numbers<[1], [0], [0], [1], [0, 0, 1, 1], [], []>} : vector<8x2304xbf16>, vector<2304x256xbf16>, vector<8x256xf32> -> vector<8x256xf32>
    %c0_14 = arith.constant 0 : index
    %c0_15 = arith.constant 0 : index
    %14 = vector.load %arg7[%c0_14, %c0_15] : memref<1x256xf32, #tpu.memory_space<vmem>>, vector<1x256xf32>
    %15 = vector.broadcast %14 : vector<1x256xf32> to vector<8x256xf32>
    %16 = arith.addf %13, %15 : vector<8x256xf32>
    %cst_16 = arith.constant 0.000000e+00 : f32
    %17 = vector.broadcast %cst_16 : f32 to vector<8x256xf32>
    %18 = arith.maximumf %16, %17 : vector<8x256xf32>
    %19 = arith.truncf %18 : vector<8x256xf32> to vector<8x256xbf16>
    %c0_17 = arith.constant 0 : index
    %c0_18 = arith.constant 0 : index
    %20 = vector.load %arg8[%c0_17, %c0_18] : memref<256x256xbf16, #tpu.memory_space<vmem>>, vector<256x256xbf16>
    %cst_19 = arith.constant dense<0.000000e+00> : vector<8x256xf32>
    %21 = tpu.matmul %19, %20, %cst_19 {dimension_numbers = #tpu.dot_dimension_numbers<[1], [0], [0], [1], [0, 0, 1, 1], [], []>} : vector<8x256xbf16>, vector<256x256xbf16>, vector<8x256xf32> -> vector<8x256xf32>
    %22 = arith.addf %10, %21 : vector<8x256xf32>
    %c0_20 = arith.constant 0 : index
    %c0_21 = arith.constant 0 : index
    %23 = vector.load %arg9[%c0_20, %c0_21] : memref<1x256xf32, #tpu.memory_space<vmem>>, vector<1x256xf32>
    %24 = vector.broadcast %23 : vector<1x256xf32> to vector<8x256xf32>
    %25 = arith.addf %22, %24 : vector<8x256xf32>
    %cst_22 = arith.constant 0.000000e+00 : f32
    %26 = vector.broadcast %cst_22 : f32 to vector<8x256xf32>
    %27 = arith.maximumf %25, %26 : vector<8x256xf32>
    %c0_23 = arith.constant 0 : index
    %c0_24 = arith.constant 0 : index
    %28 = vector.load %arg10[%c0_23, %c0_24] : memref<1x256xf32, #tpu.memory_space<vmem>>, vector<1x256xf32>
    %29 = vector.broadcast %28 : vector<1x256xf32> to vector<8x256xf32>
    %30 = arith.mulf %27, %29 : vector<8x256xf32>
    %cst_25 = arith.constant dense<0.000000e+00> : vector<8xf32>
    %31 = vector.multi_reduction <add>, %30, %cst_25 [1] : vector<8x256xf32> to vector<8xf32>
    %32 = vector.shape_cast %31 : vector<8xf32> to vector<8x1xf32>
    %c0_26 = arith.constant 0 : index
    %c0_27 = arith.constant 0 : index
    %33 = vector.load %arg11[%c0_26, %c0_27] : memref<1x1xf32, #tpu.memory_space<vmem>>, vector<1x1xf32>
    %34 = vector.broadcast %33 : vector<1x1xf32> to vector<8x1xf32>
    %35 = arith.addf %32, %34 : vector<8x1xf32>
    %cst_28 = arith.constant 0.000000e+00 : f32
    %36 = vector.broadcast %cst_28 : f32 to vector<8x1xf32>
    %37 = arith.subf %36, %35 : vector<8x1xf32>
    %38 = math.exp %37 : vector<8x1xf32>
    %cst_29 = arith.constant 1.000000e+00 : f32
    %39 = vector.broadcast %cst_29 : f32 to vector<8x1xf32>
    %40 = arith.addf %39, %38 : vector<8x1xf32>
    %cst_30 = arith.constant 1.000000e+00 : f32
    %41 = vector.broadcast %cst_30 : f32 to vector<8x1xf32>
    %42 = arith.divf %41, %40 : vector<8x1xf32>
    %c0_31 = arith.constant 0 : index
    %c0_32 = arith.constant 0 : index
    %43 = vector.load %arg12[%c0_31, %c0_32] : memref<8x1xf32, #tpu.memory_space<vmem>>, vector<8x1xf32>
    tpu.vector_store %arg12[%c0_31, %c0_32], %42 {strides = array<i32>} : memref<8x1xf32, #tpu.memory_space<vmem>>, vector<8x1xf32>,
    return
  }
  func.func @transform_0(%arg0: i32) -> (i32, i32) {
    %c0_i32 = arith.constant 0 : i32
    %c0_i32_0 = arith.constant 0 : i32
    return %arg0, %c0_i32 : i32, i32
  }
  func.func @transform_1(%arg0: i32) -> (i32, i32) {
    %c0_i32 = arith.constant 0 : i32
    %c0_i32_0 = arith.constant 0 : i32
    return %arg0, %c0_i32 : i32, i32
  }
  func.func @transform_2(%arg0: i32) -> (i32, i32) {
    %c0_i32 = arith.constant 0 : i32
    %c0_i32_0 = arith.constant 0 : i32
    %c0_i32_1 = arith.constant 0 : i32
    return %c0_i32, %c0_i32_0 : i32, i32
  }
  func.func @transform_3(%arg0: i32) -> (i32, i32) {
    %c0_i32 = arith.constant 0 : i32
    %c0_i32_0 = arith.constant 0 : i32
    %c0_i32_1 = arith.constant 0 : i32
    return %c0_i32, %c0_i32_0 : i32, i32
  }
  func.func @transform_4(%arg0: i32) -> (i32, i32) {
    %c0_i32 = arith.constant 0 : i32
    %c0_i32_0 = arith.constant 0 : i32
    %c0_i32_1 = arith.constant 0 : i32
    return %c0_i32, %c0_i32_0 : i32, i32
  }
  func.func @transform_5(%arg0: i32) -> (i32, i32) {
    %c0_i32 = arith.constant 0 : i32
    %c0_i32_0 = arith.constant 0 : i32
    %c0_i32_1 = arith.constant 0 : i32
    return %c0_i32, %c0_i32_0 : i32, i32
  }
  func.func @transform_6(%arg0: i32) -> (i32, i32) {
    %c0_i32 = arith.constant 0 : i32
    %c0_i32_0 = arith.constant 0 : i32
    %c0_i32_1 = arith.constant 0 : i32
    return %c0_i32, %c0_i32_0 : i32, i32
  }
  func.func @transform_7(%arg0: i32) -> (i32, i32) {
    %c0_i32 = arith.constant 0 : i32
    %c0_i32_0 = arith.constant 0 : i32
    %c0_i32_1 = arith.constant 0 : i32
    return %c0_i32, %c0_i32_0 : i32, i32
  }
  func.func @transform_8(%arg0: i32) -> (i32, i32) {
    %c0_i32 = arith.constant 0 : i32
    %c0_i32_0 = arith.constant 0 : i32
    %c0_i32_1 = arith.constant 0 : i32
    return %c0_i32, %c0_i32_0 : i32, i32
  }
  func.func @transform_9(%arg0: i32) -> (i32, i32) {
    %c0_i32 = arith.constant 0 : i32
    %c0_i32_0 = arith.constant 0 : i32
    %c0_i32_1 = arith.constant 0 : i32
    return %c0_i32, %c0_i32_0 : i32, i32
  }
  func.func @transform_10(%arg0: i32) -> (i32, i32) {
    %c0_i32 = arith.constant 0 : i32
    %c0_i32_0 = arith.constant 0 : i32
    %c0_i32_1 = arith.constant 0 : i32
    return %c0_i32, %c0_i32_0 : i32, i32
  }
  func.func @transform_11(%arg0: i32) -> (i32, i32) {
    %c0_i32 = arith.constant 0 : i32
    %c0_i32_0 = arith.constant 0 : i32
    return %arg0, %c0_i32 : i32, i32
  }
}

</mosaic_0001>

<llo_original>
// kernel: tpu_custom_call.1
$region0: #{tpu_custom_call.1}
  #allocation0 [shape = 'u32[]', space=smem, size = 0x4, offset = 0x4, fixed_abs, tag = 'smem constant byte address 0x4 - core index']
  #allocation1 [shape = 'u32[144,128]{1,0:T(1,128)}', space=vmem, size = 0x12000, scoped, tag = 'internal scratch']
  #allocation2 [shape = 'f32[1,1]{1,0:T(1,128)S(1)}', space=vmem, size = 0x200, scoped, tag = 'scoped memory for tpu_custom_call.1']
  %s0 = inlined_call_operand.hbm [shape: bf16[8,32], index: 0, kind: input, shape index: {}]
  %s1 = inlined_call_operand.hbm [shape: bf16[8,2304], index: 1, kind: input, shape index: {}]
  %s2 = inlined_call_operand.hbm [shape: bf16[32,256], index: 2, kind: input, shape index: {}]
  %s3 = inlined_call_operand.hbm [shape: f32[1,256], index: 3, kind: input, shape index: {}]
  %s4 = inlined_call_operand.hbm [shape: bf16[256,256], index: 4, kind: input, shape index: {}]
  %s5 = inlined_call_operand.hbm [shape: bf16[2304,256], index: 5, kind: input, shape index: {}]
  %s6 = inlined_call_operand.hbm [shape: f32[1,256], index: 6, kind: input, shape index: {}]
  %s7 = inlined_call_operand.hbm [shape: bf16[256,256], index: 7, kind: input, shape index: {}]
  %s8 = inlined_call_operand.hbm [shape: f32[1,256], index: 8, kind: input, shape index: {}]
  %s9 = inlined_call_operand.hbm [shape: f32[1,256], index: 9, kind: input, shape index: {}]
  %s10 = inlined_call_operand.<no memory space> [shape: f32[1,1], index: 10, kind: input, shape index: {}]
  %s11 = inlined_call_operand.vmem [shape: f32[8,1], index: 11, kind: output, shape index: {}]
  %s12 = sld [smem:[#allocation0]]
  $region94: #{tpu_custom_call.1} parent=0
    _
  %s14 = ssub.s32 1, %s12
  %s15 = scalar_select 0, %s14, %s12
  %v16 = vstv %s10
  %17 = vst [vmem:[#allocation2] sm:$0x1] %v16
  $region1: #{tpu_custom_call.1} parent=0
    #allocation3 [shape = 'u8[2048]{0}', space=vmem, size = 0x800, scoped, tag = 'input window, operand 0, single buffered']
    #allocation4 [shape = 's32[1]{0}', space=sflag, size = 0x4, scoped, tag = 'scoped memory for tpu_custom_call.1']
    #allocation5 [shape = 'u8[36864]{0}', space=vmem, size = 0x9000, scoped, tag = 'input window, operand 1, single buffered']
    #allocation6 [shape = 's32[1]{0}', space=sflag, size = 0x4, scoped, tag = 'scoped memory for tpu_custom_call.1']
    #allocation7 [shape = 'u8[16384]{0}', space=vmem, size = 0x4000, scoped, tag = 'input window, operand 2, single buffered']
    #allocation8 [shape = 'u8[1024]{0}', space=vmem, size = 0x400, scoped, tag = 'input window, operand 3, single buffered']
    #allocation9 [shape = 's32[1]{0}', space=sflag, size = 0x4, scoped, tag = 'scoped memory for tpu_custom_call.1']
    #allocation10 [shape = 'u8[131072]{0}', space=vmem, size = 0x20000, scoped, tag = 'input window, operand 4, single buffered']
    #allocation11 [shape = 'u8[1179648]{0}', space=vmem, size = 0x120000, scoped, tag = 'input window, operand 5, single buffered']
    #allocation12 [shape = 's32[1]{0}', space=sflag, size = 0x4, scoped, tag = 'scoped memory for tpu_custom_call.1']
    #allocation13 [shape = 'u8[1024]{0}', space=vmem, size = 0x400, scoped, tag = 'input window, operand 6, single buffered']
    #allocation14 [shape = 'u8[131072]{0}', space=vmem, size = 0x20000, scoped, tag = 'input window, operand 7, single buffered']
    #allocation15 [shape = 's32[1]{0}', space=sflag, size = 0x4, scoped, tag = 'scoped memory for tpu_custom_call.1']
    #allocation16 [shape = 'u8[1024]{0}', space=vmem, size = 0x400, scoped, tag = 'input window, operand 8, single buffered']
    #allocation17 [shape = 'u8[1024]{0}', space=vmem, size = 0x400, scoped, tag = 'input window, operand 9, single buffered']
    #allocation18 [shape = 's32[1]{0}', space=sflag, size = 0x4, scoped, tag = 'scoped memory for tpu_custom_call.1']
    %18 = vsyncpa [#allocation4], 0
    %19 = vsyncpa [#allocation6], 0
    %20 = vsyncpa [#allocation9], 0
    %21 = vsyncpa [#allocation12], 0
    %22 = vsyncpa [#allocation15], 0
    %23 = vsyncpa [#allocation18], 0
    // Predicated region
    $region2: #{tpu_custom_call.1} parent=1 // pred_check
      _
    $region3: #{tpu_custom_call.1} parent=1 // pred_check_branch
      %25 = sbr.rel (0) target = $region5
    $region4: #{tpu_custom_call.1} parent=1 // pred_region
      %s27 = ssub.s32 64, 64
      %28 = vsyncadd [#allocation4], %s27
      %s30 = sshll.u32 [#allocation3], 4
      %s31 = int_to_ptr.vmem [resolvable:$true] %s30
      %33 = dma.hbm_to_vmem [thread:$0]  %s0, 64, %s31, [#allocation4]
    $region5: #{tpu_custom_call.1} parent=1 // pred_fallthru
      _
    // Predicated region
    $region6: #{tpu_custom_call.1} parent=1 // pred_check
      _
    $region7: #{tpu_custom_call.1} parent=1 // pred_check_branch
      %35 = sbr.rel (0) target = $region9
    $region8: #{tpu_custom_call.1} parent=1 // pred_region
      %s37 = ssub.s32 1152, 1152
      %38 = vsyncadd [#allocation6], %s37
      %s40 = sshll.u32 [#allocation5], 4
      %s41 = int_to_ptr.vmem [resolvable:$true] %s40
      %43 = dma.hbm_to_vmem [thread:$0]  %s1, 1152, %s41, [#allocation6]
    $region9: #{tpu_custom_call.1} parent=1 // pred_fallthru
      _
    // Predicated region
    $region10: #{tpu_custom_call.1} parent=1 // pred_check
      _
    $region11: #{tpu_custom_call.1} parent=1 // pred_check_branch
      %45 = sbr.rel (0) target = $region13
    $region12: #{tpu_custom_call.1} parent=1 // pred_region
      %s47 = ssub.s32 512, 512
      %48 = vsyncadd [#allocation6], %s47
      %s49 = sshll.u32 [#allocation7], 4
      %s50 = int_to_ptr.vmem [resolvable:$true] %s49
      %55 = dma.hbm_to_vmem [thread:$0]  %s2, 512, %s50, [#allocation6], 128, 128, 8
    $region13: #{tpu_custom_call.1} parent=1 // pred_fallthru
      _
    // Predicated region
    $region14: #{tpu_custom_call.1} parent=1 // pred_check
      _
    $region15: #{tpu_custom_call.1} parent=1 // pred_check_branch
      %57 = sbr.rel (0) target = $region17
    $region16: #{tpu_custom_call.1} parent=1 // pred_region
      %s59 = ssub.s32 32, 32
      %60 = vsyncadd [#allocation9], %s59
      %s62 = sshll.u32 [#allocation8], 4
      %s63 = int_to_ptr.vmem [resolvable:$true] %s62
      %65 = dma.hbm_to_vmem [thread:$0]  %s3, 32, %s63, [#allocation9]
    $region17: #{tpu_custom_call.1} parent=1 // pred_fallthru
      _
    // Predicated region
    $region18: #{tpu_custom_call.1} parent=1 // pred_check
      _
    $region19: #{tpu_custom_call.1} parent=1 // pred_check_branch
      %67 = sbr.rel (0) target = $region21
    $region20: #{tpu_custom_call.1} parent=1 // pred_region
      %s69 = ssub.s32 4096, 4096
      %70 = vsyncadd [#allocation9], %s69
      %s71 = sshll.u32 [#allocation10], 4
      %s72 = int_to_ptr.vmem [resolvable:$true] %s71
      %77 = dma.hbm_to_vmem [thread:$0]  %s4, 4096, %s72, [#allocation9], 128, 128, 8
    $region21: #{tpu_custom_call.1} parent=1 // pred_fallthru
      _
    // Predicated region
    $region22: #{tpu_custom_call.1} parent=1 // pred_check
      _
    $region23: #{tpu_custom_call.1} parent=1 // pred_check_branch
      %79 = sbr.rel (0) target = $region25
    $region24: #{tpu_custom_call.1} parent=1 // pred_region
      %s81 = ssub.s32 36864, 36864
      %82 = vsyncadd [#allocation12], %s81
      %s83 = sshll.u32 [#allocation11], 4
      %s84 = int_to_ptr.vmem [resolvable:$true] %s83
      %89 = dma.hbm_to_vmem [thread:$0]  %s5, 36864, %s84, [#allocation12], 128, 128, 8
    $region25: #{tpu_custom_call.1} parent=1 // pred_fallthru
      _
    // Predicated region
    $region26: #{tpu_custom_call.1} parent=1 // pred_check
      _
    $region27: #{tpu_custom_call.1} parent=1 // pred_check_branch
      %91 = sbr.rel (0) target = $region29
    $region28: #{tpu_custom_call.1} parent=1 // pred_region
      %s93 = ssub.s32 32, 32
      %94 = vsyncadd [#allocation12], %s93
      %s96 = sshll.u32 [#allocation13], 4
      %s97 = int_to_ptr.vmem [resolvable:$true] %s96
      %99 = dma.hbm_to_vmem [thread:$0]  %s6, 32, %s97, [#allocation12]
    $region29: #{tpu_custom_call.1} parent=1 // pred_fallthru
      _
    // Predicated region
    $region30: #{tpu_custom_call.1} parent=1 // pred_check
      _
    $region31: #{tpu_custom_call.1} parent=1 // pred_check_branch
      %101 = sbr.rel (0) target = $region33
    $region32: #{tpu_custom_call.1} parent=1 // pred_region
      %s103 = ssub.s32 4096, 4096
      %104 = vsyncadd [#allocation15], %s103
      %s105 = sshll.u32 [#allocation14], 4
      %s106 = int_to_ptr.vmem [resolvable:$true] %s105
      %111 = dma.hbm_to_vmem [thread:$0]  %s7, 4096, %s106, [#allocation15], 128, 128, 8
    $region33: #{tpu_custom_call.1} parent=1 // pred_fallthru
      _
    // Predicated region
    $region34: #{tpu_custom_call.1} parent=1 // pred_check
      _
    $region35: #{tpu_custom_call.1} parent=1 // pred_check_branch
      %113 = sbr.rel (0) target = $region37
    $region36: #{tpu_custom_call.1} parent=1 // pred_region
      %s115 = ssub.s32 32, 32
      %116 = vsyncadd [#allocation15], %s115
      %s118 = sshll.u32 [#allocation16], 4
      %s119 = int_to_ptr.vmem [resolvable:$true] %s118
      %121 = dma.hbm_to_vmem [thread:$0]  %s8, 32, %s119, [#allocation15]
    $region37: #{tpu_custom_call.1} parent=1 // pred_fallthru
      _
    // Predicated region
    $region38: #{tpu_custom_call.1} parent=1 // pred_check
      _
    $region39: #{tpu_custom_call.1} parent=1 // pred_check_branch
      %123 = sbr.rel (0) target = $region41
    $region40: #{tpu_custom_call.1} parent=1 // pred_region
      %s125 = ssub.s32 32, 32
      %126 = vsyncadd [#allocation18], %s125
      %s128 = sshll.u32 [#allocation17], 4
      %s129 = int_to_ptr.vmem [resolvable:$true] %s128
      %131 = dma.hbm_to_vmem [thread:$0]  %s9, 32, %s129, [#allocation18]
    $region41: #{tpu_custom_call.1} parent=1 // pred_fallthru
      _
    // Predicated region
    $region42: #{tpu_custom_call.1} parent=1 // pred_check
      _
    $region43: #{tpu_custom_call.1} parent=1 // pred_check_branch
      %133 = sbr.rel (0) target = $region45
    $region44: #{tpu_custom_call.1} parent=1 // pred_region
      _
    $region45: #{tpu_custom_call.1} parent=1 // pred_fallthru
      _
    // Predicated region
    $region46: #{tpu_custom_call.1} parent=1 // pred_check
      _
    $region47: #{tpu_custom_call.1} parent=1 // pred_check_branch
      %135 = sbr.rel (0) target = $region49
    $region48: #{tpu_custom_call.1} parent=1 // pred_region
      %136 = dma.done [#allocation4], 64
    $region49: #{tpu_custom_call.1} parent=1 // pred_fallthru
      _
    // Predicated region
    $region50: #{tpu_custom_call.1} parent=1 // pred_check
      _
    $region51: #{tpu_custom_call.1} parent=1 // pred_check_branch
      %138 = sbr.rel (0) target = $region53
    $region52: #{tpu_custom_call.1} parent=1 // pred_region
      %139 = dma.done [#allocation6], 1152
    $region53: #{tpu_custom_call.1} parent=1 // pred_fallthru
      _
    // Predicated region
    $region54: #{tpu_custom_call.1} parent=1 // pred_check
      _
    $region55: #{tpu_custom_call.1} parent=1 // pred_check_branch
      %141 = sbr.rel (0) target = $region57
    $region56: #{tpu_custom_call.1} parent=1 // pred_region
      %142 = dma.done [#allocation6], 512
    $region57: #{tpu_custom_call.1} parent=1 // pred_fallthru
      _
    // Predicated region
    $region58: #{tpu_custom_call.1} parent=1 // pred_check
      _
    $region59: #{tpu_custom_call.1} parent=1 // pred_check_branch
      %144 = sbr.rel (0) target = $region61
    $region60: #{tpu_custom_call.1} parent=1 // pred_region
      %145 = dma.done [#allocation9], 32
    $region61: #{tpu_custom_call.1} parent=1 // pred_fallthru
      _
    // Predicated region
    $region62: #{tpu_custom_call.1} parent=1 // pred_check
      _
    $region63: #{tpu_custom_call.1} parent=1 // pred_check_branch
      %147 = sbr.rel (0) target = $region65
    $region64: #{tpu_custom_call.1} parent=1 // pred_region
      %148 = dma.done [#allocation9], 4096
    $region65: #{tpu_custom_call.1} parent=1 // pred_fallthru
      _
    // Predicated region
    $region66: #{tpu_custom_call.1} parent=1 // pred_check
      _
    $region67: #{tpu_custom_call.1} parent=1 // pred_check_branch
      %150 = sbr.rel (0) target = $region69
    $region68: #{tpu_custom_call.1} parent=1 // pred_region
      %151 = dma.done [#allocation12], 36864
    $region69: #{tpu_custom_call.1} parent=1 // pred_fallthru
      _
    // Predicated region
    $region70: #{tpu_custom_call.1} parent=1 // pred_check
      _
    $region71: #{tpu_custom_call.1} parent=1 // pred_check_branch
      %153 = sbr.rel (0) target = $region73
    $region72: #{tpu_custom_call.1} parent=1 // pred_region
      %154 = dma.done [#allocation12], 32
    $region73: #{tpu_custom_call.1} parent=1 // pred_fallthru
      _
    // Predicated region
    $region74: #{tpu_custom_call.1} parent=1 // pred_check
      _
    $region75: #{tpu_custom_call.1} parent=1 // pred_check_branch
      %156 = sbr.rel (0) target = $region77
    $region76: #{tpu_custom_call.1} parent=1 // pred_region
      %157 = dma.done [#allocation15], 4096
    $region77: #{tpu_custom_call.1} parent=1 // pred_fallthru
      _
    // Predicated region
    $region78: #{tpu_custom_call.1} parent=1 // pred_check
      _
    $region79: #{tpu_custom_call.1} parent=1 // pred_check_branch
      %159 = sbr.rel (0) target = $region81
    $region80: #{tpu_custom_call.1} parent=1 // pred_region
      %160 = dma.done [#allocation15], 32
    $region81: #{tpu_custom_call.1} parent=1 // pred_fallthru
      _
    // Predicated region
    $region82: #{tpu_custom_call.1} parent=1 // pred_check
      _
    $region83: #{tpu_custom_call.1} parent=1 // pred_check_branch
      %162 = sbr.rel (0) target = $region85
    $region84: #{tpu_custom_call.1} parent=1 // pred_region
      %163 = dma.done [#allocation18], 32
    $region85: #{tpu_custom_call.1} parent=1 // pred_fallthru
      _
    %v165 = vld [vmem:[#allocation3] sm:$0xf]
    %v166 = vld [vmem:[#allocation7] sm:$0xff]
    %v167 = vld [vmem:[#allocation7 + $0x8] sm:$0xff]
    %v168 = vld [vmem:[#allocation7 + $0x10] sm:$0xff]
    %v169 = vld [vmem:[#allocation7 + $0x18] sm:$0xff]
    %v170 = vld [vmem:[#allocation8] sm:$0x3]
    %v172 = vlaneseq
    %v173 = vshrl.u32 %v172, 7
    %v174 = vsub.s32 0, %v173
    %v175 = vrot.slane %v170, %v174
    %v176 = vlaneseq
    %v177 = vshrl.u32 %v176, 7
    %v178 = vsub.s32 1, %v177
    %v179 = vrot.slane %v170, %v178
    %v186 = vunpack.c.l.b16 %v166
    %v187 = vunpack.c.h.b16 %v166
    %v188 = vunpack.c.l.b16 %v167
    %v189 = vunpack.c.h.b16 %v167
    %v190 = vunpack.c.l.b16 %v168
    %v191 = vunpack.c.h.b16 %v168
    %v192 = vunpack.c.l.b16 %v169
    %v193 = vunpack.c.h.b16 %v169
    %v194 = vpack.c.b16 %v188, %v186
    %v195 = vpack.c.b16 %v189, %v187
    %v196 = vpack.c.b16 %v192, %v190
    %v197 = vpack.c.b16 %v193, %v191
    %vm202 = vcmask 261120
    %v204 = vsel %vm202, %v165, 0
    %206 = vmatprep.subr.bf16.mxu0 %v195
    %207 = vmatpush1.bf16.msra.mxu0 %v194
    %208 = vmatprep.subr.bf16.mxu0 %v197
    %209 = vmatpush1.bf16.msra.mxu0 %v196
    %210 = vmatprep.subr.bf16.mxu0 0
    %211 = vmatpush1.bf16.msra.mxu0 0
    %212 = vmatprep.subr.bf16.mxu0 0
    %213 = vmatpush1.bf16.msra.mxu0 0
    %214 = vmatprep.subr.bf16.mxu0 0
    %215 = vmatpush1.bf16.msra.mxu0 0
    %216 = vmatprep.subr.bf16.mxu0 0
    %217 = vmatpush1.bf16.msra.mxu0 0
    %218 = vmatprep.subr.bf16.mxu0 0
    %219 = vmatpush1.bf16.msra.mxu0 0
    %220 = vmatprep.subr.bf16.mxu0 0
    %221 = vmatpush1.bf16.msra.mxu0 0
    %222 = vmatprep.subr.bf16.mxu0 0
    %223 = vmatpush1.bf16.msra.mxu0 0
    %224 = vmatprep.subr.bf16.mxu0 0
    %225 = vmatpush1.bf16.msra.mxu0 0
    %226 = vmatprep.subr.bf16.mxu0 0
    %227 = vmatpush1.bf16.msra.mxu0 0
    %228 = vmatprep.subr.bf16.mxu0 0
    %229 = vmatpush1.bf16.msra.mxu0 0
    %230 = vmatprep.subr.bf16.mxu0 0
    %231 = vmatpush1.bf16.msra.mxu0 0
    %232 = vmatprep.subr.bf16.mxu0 0
    %233 = vmatpush1.bf16.msra.mxu0 0
    %234 = vmatprep.subr.bf16.mxu0 0
    %235 = vmatpush1.bf16.msra.mxu0 0
    %236 = vmatprep.subr.bf16.mxu0 0
    %237 = vmatpush1.bf16.msra.mxu0 0
    %238 = vmatprep.mubr.bf16.mxu0 0
    %239 = vmatmul.mubr.bf16.gmra.mrb[0].mxu0 %v204
    %v240 = vpop.f32.mrb[0].mxu0
    %v241 = vadd.f32 %v175, %v240
    %v242 = vpop.f32.mrb[0].mxu0
    %v243 = vadd.f32 %v179, %v242
    %v244 = vpop.f32.mrb[0].mxu0
    %v245 = vpop.f32.mrb[0].mxu0
    %246 = vdwg.mxu0
    %v247 = vmax.f32 %v241, 0.0
    %v248 = vmax.f32 %v243, 0.0
    %v249 = vpack.c.bf16 %v247, %v247
    %v250 = vpack.c.bf16 %v248, %v248
    %v251 = vld [vmem:[#allocation10] sm:$0xff]
    %v252 = vld [vmem:[#allocation10 + $0x8] sm:$0xff]
    %v253 = vld [vmem:[#allocation10 + $0x10] sm:$0xff]
    %v254 = vld [vmem:[#allocation10 + $0x18] sm:$0xff]
    %v255 = vld [vmem:[#allocation10 + $0x20] sm:$0xff]
    %v256 = vld [vmem:[#allocation10 + $0x28] sm:$0xff]
    %v257 = vld [vmem:[#allocation10 + $0x30] sm:$0xff]
    %v258 = vld [vmem:[#allocation10 + $0x38] sm:$0xff]
    %v259 = vld [vmem:[#allocation10 + $0x40] sm:$0xff]
    %v260 = vld [vmem:[#allocation10 + $0x48] sm:$0xff]
    %v261 = vld [vmem:[#allocation10 + $0x50] sm:$0xff]
    %v262 = vld [vmem:[#allocation10 + $0x58] sm:$0xff]
    %v263 = vld [vmem:[#allocation10 + $0x60] sm:$0xff]
    %v264 = vld [vmem:[#allocation10 + $0x68] sm:$0xff]
    %v265 = vld [vmem:[#allocation10 + $0x70] sm:$0xff]
    %v266 = vld [vmem:[#allocation10 + $0x78] sm:$0xff]
    %v267 = vld [vmem:[#allocation10 + $0x80] sm:$0xff]
    %v268 = vld [vmem:[#allocation10 + $0x88] sm:$0xff]
    %v269 = vld [vmem:[#allocation10 + $0x90] sm:$0xff]
    %v270 = vld [vmem:[#allocation10 + $0x98] sm:$0xff]
    %v271 = vld [vmem:[#allocation10 + $0xa0] sm:$0xff]
    %v272 = vld [vmem:[#allocation10 + $0xa8] sm:$0xff]
    %v273 = vld [vmem:[#allocation10 + $0xb0] sm:$0xff]
    %v274 = vld [vmem:[#allocation10 + $0xb8] sm:$0xff]
    %v275 = vld [vmem:[#allocation10 + $0xc0] sm:$0xff]
    %v276 = vld [vmem:[#allocation10 + $0xc8] sm:$0xff]
    %v277 = vld [vmem:[#allocation10 + $0xd0] sm:$0xff]
    %v278 = vld [vmem:[#allocation10 + $0xd8] sm:$0xff]
    %v279 = vld [vmem:[#allocation10 + $0xe0] sm:$0xff]
    %v280 = vld [vmem:[#allocation10 + $0xe8] sm:$0xff]
    %v281 = vld [vmem:[#allocation10 + $0xf0] sm:$0xff]
    %v282 = vld [vmem:[#allocation10 + $0xf8] sm:$0xff]
    %v283 = vld [vmem:[#allocation5] sm:$0xff]
    %v284 = vld [vmem:[#allocation5 + $0x8] sm:$0xff]
    %v285 = vld [vmem:[#allocation5 + $0x10] sm:$0xff]
    %v286 = vld [vmem:[#allocation5 + $0x18] sm:$0xff]
    %v287 = vld [vmem:[#allocation5 + $0x20] sm:$0xff]
    %v288 = vld [vmem:[#allocation5 + $0x28] sm:$0xff]
    %v289 = vld [vmem:[#allocation5 + $0x30] sm:$0xff]
    %v290 = vld [vmem:[#allocation5 + $0x38] sm:$0xff]
    %v291 = vld [vmem:[#allocation5 + $0x40] sm:$0xff]
    %v292 = vld [vmem:[#allocation11] sm:$0xff]
    %v293 = vld [vmem:[#allocation11 + $0x8] sm:$0xff]
    %v294 = vld [vmem:[#allocation11 + $0x10] sm:$0xff]
    %v295 = vld [vmem:[#allocation11 + $0x18] sm:$0xff]
    %v296 = vld [vmem:[#allocation11 + $0x20] sm:$0xff]
    %v297 = vld [vmem:[#allocation11 + $0x28] sm:$0xff]
    %v298 = vld [vmem:[#allocation11 + $0x30] sm:$0xff]
    %v299 = vld [vmem:[#allocation11 + $0x38] sm:$0xff]
    %v300 = vld [vmem:[#allocation11 + $0x40] sm:$0xff]
    %v301 = vld [vmem:[#allocation11 + $0x48] sm:$0xff]
    %v302 = vld [vmem:[#allocation11 + $0x50] sm:$0xff]
    %v303 = vld [vmem:[#allocation11 + $0x58] sm:$0xff]
    %v304 = vld [vmem:[#allocation11 + $0x60] sm:$0xff]
    %v305 = vld [vmem:[#allocation11 + $0x68] sm:$0xff]
    %v306 = vld [vmem:[#allocation11 + $0x70] sm:$0xff]
    %v307 = vld [vmem:[#allocation11 + $0x78] sm:$0xff]
    %v308 = vld [vmem:[#allocation11 + $0x80] sm:$0xff]
    %v309 = vld [vmem:[#allocation11 + $0x88] sm:$0xff]
    %v310 = vld [vmem:[#allocation11 + $0x90] sm:$0xff]
    %v311 = vld [vmem:[#allocation11 + $0x98] sm:$0xff]
    %v312 = vld [vmem:[#allocation11 + $0xa0] sm:$0xff]
    %v313 = vld [vmem:[#allocation11 + $0xa8] sm:$0xff]
    %v314 = vld [vmem:[#allocation11 + $0xb0] sm:$0xff]
    %v315 = vld [vmem:[#allocation11 + $0xb8] sm:$0xff]
    %v316 = vld [vmem:[#allocation11 + $0xc0] sm:$0xff]
    %v317 = vld [vmem:[#allocation11 + $0xc8] sm:$0xff]
    %v318 = vld [vmem:[#allocation11 + $0xd0] sm:$0xff]
    %v319 = vld [vmem:[#allocation11 + $0xd8] sm:$0xff]
    %v320 = vld [vmem:[#allocation11 + $0xe0] sm:$0xff]
    %v321 = vld [vmem:[#allocation11 + $0xe8] sm:$0xff]
    %v322 = vld [vmem:[#allocation11 + $0xf0] sm:$0xff]
    %v323 = vld [vmem:[#allocation11 + $0xf8] sm:$0xff]
    %v324 = vld [vmem:[#allocation11 + $0x100] sm:$0xff]
    %v325 = vld [vmem:[#allocation11 + $0x108] sm:$0xff]
    %v326 = vld [vmem:[#allocation11 + $0x110] sm:$0xff]
    %v327 = vld [vmem:[#allocation11 + $0x118] sm:$0xff]
    %v328 = vld [vmem:[#allocation11 + $0x120] sm:$0xff]
    %v329 = vld [vmem:[#allocation11 + $0x128] sm:$0xff]
    %v330 = vld [vmem:[#allocation11 + $0x130] sm:$0xff]
    %v331 = vld [vmem:[#allocation11 + $0x138] sm:$0xff]
    %v332 = vld [vmem:[#allocation11 + $0x140] sm:$0xff]
    %v333 = vld [vmem:[#allocation11 + $0x148] sm:$0xff]
    %v334 = vld [vmem:[#allocation11 + $0x150] sm:$0xff]
    %v335 = vld [vmem:[#allocation11 + $0x158] sm:$0xff]
    %v336 = vld [vmem:[#allocation11 + $0x160] sm:$0xff]
    %v337 = vld [vmem:[#allocation11 + $0x168] sm:$0xff]
    %v338 = vld [vmem:[#allocation11 + $0x170] sm:$0xff]
    %v339 = vld [vmem:[#allocation11 + $0x178] sm:$0xff]
    %v340 = vld [vmem:[#allocation11 + $0x180] sm:$0xff]
    %v341 = vld [vmem:[#allocation11 + $0x188] sm:$0xff]
    %v342 = vld [vmem:[#allocation11 + $0x190] sm:$0xff]
    %v343 = vld [vmem:[#allocation11 + $0x198] sm:$0xff]
    %v344 = vld [vmem:[#allocation11 + $0x1a0] sm:$0xff]
    %v345 = vld [vmem:[#allocation11 + $0x1a8] sm:$0xff]
    %v346 = vld [vmem:[#allocation11 + $0x1b0] sm:$0xff]
    %v347 = vld [vmem:[#allocation11 + $0x1b8] sm:$0xff]
    %v348 = vld [vmem:[#allocation11 + $0x1c0] sm:$0xff]
    %v349 = vld [vmem:[#allocation11 + $0x1c8] sm:$0xff]
    %v350 = vld [vmem:[#allocation11 + $0x1d0] sm:$0xff]
    %v351 = vld [vmem:[#allocation11 + $0x1d8] sm:$0xff]
    %v352 = vld [vmem:[#allocation11 + $0x1e0] sm:$0xff]
    %v353 = vld [vmem:[#allocation11 + $0x1e8] sm:$0xff]
    %v354 = vld [vmem:[#allocation11 + $0x1f0] sm:$0xff]
    %v355 = vld [vmem:[#allocation11 + $0x1f8] sm:$0xff]
    %v356 = vld [vmem:[#allocation11 + $0x200] sm:$0xff]
    %v357 = vld [vmem:[#allocation11 + $0x208] sm:$0xff]
    %v358 = vld [vmem:[#allocation11 + $0x210] sm:$0xff]
    %v359 = vld [vmem:[#allocation11 + $0x218] sm:$0xff]
    %v360 = vld [vmem:[#allocation11 + $0x220] sm:$0xff]
    %v361 = vld [vmem:[#allocation11 + $0x228] sm:$0xff]
    %v362 = vld [vmem:[#allocation11 + $0x230] sm:$0xff]
    %v363 = vld [vmem:[#allocation11 + $0x238] sm:$0xff]
    %v364 = vld [vmem:[#allocation11 + $0x240] sm:$0xff]
    %v365 = vld [vmem:[#allocation11 + $0x248] sm:$0xff]
    %v366 = vld [vmem:[#allocation11 + $0x250] sm:$0xff]
    %v367 = vld [vmem:[#allocation11 + $0x258] sm:$0xff]
    %v368 = vld [vmem:[#allocation11 + $0x260] sm:$0xff]
    %v369 = vld [vmem:[#allocation11 + $0x268] sm:$0xff]
    %v370 = vld [vmem:[#allocation11 + $0x270] sm:$0xff]
    %v371 = vld [vmem:[#allocation11 + $0x278] sm:$0xff]
    %v372 = vld [vmem:[#allocation11 + $0x280] sm:$0xff]
    %v373 = vld [vmem:[#allocation11 + $0x288] sm:$0xff]
    %v374 = vld [vmem:[#allocation11 + $0x290] sm:$0xff]
    %v375 = vld [vmem:[#allocation11 + $0x298] sm:$0xff]
    %v376 = vld [vmem:[#allocation11 + $0x2a0] sm:$0xff]
    %v377 = vld [vmem:[#allocation11 + $0x2a8] sm:$0xff]
    %v378 = vld [vmem:[#allocation11 + $0x2b0] sm:$0xff]
    %v379 = vld [vmem:[#allocation11 + $0x2b8] sm:$0xff]
    %v380 = vld [vmem:[#allocation11 + $0x2c0] sm:$0xff]
    %v381 = vld [vmem:[#allocation11 + $0x2c8] sm:$0xff]
    %v382 = vld [vmem:[#allocation11 + $0x2d0] sm:$0xff]
    %v383 = vld [vmem:[#allocation11 + $0x2d8] sm:$0xff]
    %v384 = vld [vmem:[#allocation11 + $0x2e0] sm:$0xff]
    %v385 = vld [vmem:[#allocation11 + $0x2e8] sm:$0xff]
    %v386 = vld [vmem:[#allocation11 + $0x2f0] sm:$0xff]
    %v387 = vld [vmem:[#allocation11 + $0x2f8] sm:$0xff]
    %v388 = vld [vmem:[#allocation11 + $0x300] sm:$0xff]
    %v389 = vld [vmem:[#allocation11 + $0x308] sm:$0xff]
    %v390 = vld [vmem:[#allocation11 + $0x310] sm:$0xff]
    %v391 = vld [vmem:[#allocation11 + $0x318] sm:$0xff]
    %v392 = vld [vmem:[#allocation11 + $0x320] sm:$0xff]
    %v393 = vld [vmem:[#allocation11 + $0x328] sm:$0xff]
    %v394 = vld [vmem:[#allocation11 + $0x330] sm:$0xff]
    %v395 = vld [vmem:[#allocation11 + $0x338] sm:$0xff]
    %v396 = vld [vmem:[#allocation11 + $0x340] sm:$0xff]
    %v397 = vld [vmem:[#allocation11 + $0x348] sm:$0xff]
    %v398 = vld [vmem:[#allocation11 + $0x350] sm:$0xff]
    %v399 = vld [vmem:[#allocation11 + $0x358] sm:$0xff]
    %v400 = vld [vmem:[#allocation11 + $0x360] sm:$0xff]
    %v401 = vld [vmem:[#allocation11 + $0x368] sm:$0xff]
    %v402 = vld [vmem:[#allocation11 + $0x370] sm:$0xff]
    %v403 = vld [vmem:[#allocation11 + $0x378] sm:$0xff]
    %v404 = vld [vmem:[#allocation11 + $0x380] sm:$0xff]
    %v405 = vld [vmem:[#allocation11 + $0x388] sm:$0xff]
    %v406 = vld [vmem:[#allocation11 + $0x390] sm:$0xff]
    %v407 = vld [vmem:[#allocation11 + $0x398] sm:$0xff]
    %v408 = vld [vmem:[#allocation11 + $0x3a0] sm:$0xff]
    %v409 = vld [vmem:[#allocation11 + $0x3a8] sm:$0xff]
    %v410 = vld [vmem:[#allocation11 + $0x3b0] sm:$0xff]
    %v411 = vld [vmem:[#allocation11 + $0x3b8] sm:$0xff]
    %v412 = vld [vmem:[#allocation11 + $0x3c0] sm:$0xff]
    %v413 = vld [vmem:[#allocation11 + $0x3c8] sm:$0xff]
    %v414 = vld [vmem:[#allocation11 + $0x3d0] sm:$0xff]
    %v415 = vld [vmem:[#allocation11 + $0x3d8] sm:$0xff]
    %v416 = vld [vmem:[#allocation11 + $0x3e0] sm:$0xff]
    %v417 = vld [vmem:[#allocation11 + $0x3e8] sm:$0xff]
    %v418 = vld [vmem:[#allocation11 + $0x3f0] sm:$0xff]
    %v419 = vld [vmem:[#allocation11 + $0x3f8] sm:$0xff]
    %v420 = vld [vmem:[#allocation11 + $0x400] sm:$0xff]
    %v421 = vld [vmem:[#allocation11 + $0x408] sm:$0xff]
    %v422 = vld [vmem:[#allocation11 + $0x410] sm:$0xff]
    %v423 = vld [vmem:[#allocation11 + $0x418] sm:$0xff]
    %v424 = vld [vmem:[#allocation11 + $0x420] sm:$0xff]
    %v425 = vld [vmem:[#allocation11 + $0x428] sm:$0xff]
    %v426 = vld [vmem:[#allocation11 + $0x430] sm:$0xff]
    %v427 = vld [vmem:[#allocation11 + $0x438] sm:$0xff]
    %v428 = vld [vmem:[#allocation11 + $0x440] sm:$0xff]
    %v429 = vld [vmem:[#allocation11 + $0x448] sm:$0xff]
    %v430 = vld [vmem:[#allocation11 + $0x450] sm:$0xff]
    %v431 = vld [vmem:[#allocation11 + $0x458] sm:$0xff]
    %v432 = vld [vmem:[#allocation11 + $0x460] sm:$0xff]
    %v433 = vld [vmem:[#allocation11 + $0x468] sm:$0xff]
    %v434 = vld [vmem:[#allocation11 + $0x470] sm:$0xff]
    %v435 = vld [vmem:[#allocation11 + $0x478] sm:$0xff]
    %v436 = vld [vmem:[#allocation11 + $0x480] sm:$0xff]
    %v437 = vld [vmem:[#allocation11 + $0x488] sm:$0xff]
    %v438 = vld [vmem:[#allocation11 + $0x490] sm:$0xff]
    %v439 = vld [vmem:[#allocation11 + $0x498] sm:$0xff]
    %v440 = vld [vmem:[#allocation11 + $0x4a0] sm:$0xff]
    %v441 = vld [vmem:[#allocation11 + $0x4a8] sm:$0xff]
    %v442 = vld [vmem:[#allocation11 + $0x4b0] sm:$0xff]
    %v443 = vld [vmem:[#allocation11 + $0x4b8] sm:$0xff]
    %v444 = vld [vmem:[#allocation11 + $0x4c0] sm:$0xff]
    %v445 = vld [vmem:[#allocation11 + $0x4c8] sm:$0xff]
    %v446 = vld [vmem:[#allocation11 + $0x4d0] sm:$0xff]
    %v447 = vld [vmem:[#allocation11 + $0x4d8] sm:$0xff]
    %v448 = vld [vmem:[#allocation11 + $0x4e0] sm:$0xff]
    %v449 = vld [vmem:[#allocation11 + $0x4e8] sm:$0xff]
    %v450 = vld [vmem:[#allocation11 + $0x4f0] sm:$0xff]
    %v451 = vld [vmem:[#allocation11 + $0x4f8] sm:$0xff]
    %v452 = vld [vmem:[#allocation11 + $0x500] sm:$0xff]
    %v453 = vld [vmem:[#allocation11 + $0x508] sm:$0xff]
    %v454 = vld [vmem:[#allocation11 + $0x510] sm:$0xff]
    %v455 = vld [vmem:[#allocation11 + $0x518] sm:$0xff]
    %v456 = vld [vmem:[#allocation11 + $0x520] sm:$0xff]
    %v457 = vld [vmem:[#allocation11 + $0x528] sm:$0xff]
    %v458 = vld [vmem:[#allocation11 + $0x530] sm:$0xff]
    %v459 = vld [vmem:[#allocation11 + $0x538] sm:$0xff]
    %v460 = vld [vmem:[#allocation11 + $0x540] sm:$0xff]
    %v461 = vld [vmem:[#allocation11 + $0x548] sm:$0xff]
    %v462 = vld [vmem:[#allocation11 + $0x550] sm:$0xff]
    %v463 = vld [vmem:[#allocation11 + $0x558] sm:$0xff]
    %v464 = vld [vmem:[#allocation11 + $0x560] sm:$0xff]
    %v465 = vld [vmem:[#allocation11 + $0x568] sm:$0xff]
    %v466 = vld [vmem:[#allocation11 + $0x570] sm:$0xff]
    %v467 = vld [vmem:[#allocation11 + $0x578] sm:$0xff]
    %v468 = vld [vmem:[#allocation11 + $0x580] sm:$0xff]
    %v469 = vld [vmem:[#allocation11 + $0x588] sm:$0xff]
    %v470 = vld [vmem:[#allocation11 + $0x590] sm:$0xff]
    %v471 = vld [vmem:[#allocation11 + $0x598] sm:$0xff]
    %v472 = vld [vmem:[#allocation11 + $0x5a0] sm:$0xff]
    %v473 = vld [vmem:[#allocation11 + $0x5a8] sm:$0xff]
    %v474 = vld [vmem:[#allocation11 + $0x5b0] sm:$0xff]
    %v475 = vld [vmem:[#allocation11 + $0x5b8] sm:$0xff]
    %v476 = vld [vmem:[#allocation11 + $0x5c0] sm:$0xff]
    %v477 = vld [vmem:[#allocation11 + $0x5c8] sm:$0xff]
    %v478 = vld [vmem:[#allocation11 + $0x5d0] sm:$0xff]
    %v479 = vld [vmem:[#allocation11 + $0x5d8] sm:$0xff]
    %v480 = vld [vmem:[#allocation11 + $0x5e0] sm:$0xff]
    %v481 = vld [vmem:[#allocation11 + $0x5e8] sm:$0xff]
    %v482 = vld [vmem:[#allocation11 + $0x5f0] sm:$0xff]
    %v483 = vld [vmem:[#allocation11 + $0x5f8] sm:$0xff]
    %v484 = vld [vmem:[#allocation11 + $0x600] sm:$0xff]
    %v485 = vld [vmem:[#allocation11 + $0x608] sm:$0xff]
    %v486 = vld [vmem:[#allocation11 + $0x610] sm:$0xff]
    %v487 = vld [vmem:[#allocation11 + $0x618] sm:$0xff]
    %v488 = vld [vmem:[#allocation11 + $0x620] sm:$0xff]
    %v489 = vld [vmem:[#allocation11 + $0x628] sm:$0xff]
    %v490 = vld [vmem:[#allocation11 + $0x630] sm:$0xff]
    %v491 = vld [vmem:[#allocation11 + $0x638] sm:$0xff]
    %v492 = vld [vmem:[#allocation11 + $0x640] sm:$0xff]
    %v493 = vld [vmem:[#allocation11 + $0x648] sm:$0xff]
    %v494 = vld [vmem:[#allocation11 + $0x650] sm:$0xff]
    %v495 = vld [vmem:[#allocation11 + $0x658] sm:$0xff]
    %v496 = vld [vmem:[#allocation11 + $0x660] sm:$0xff]
    %v497 = vld [vmem:[#allocation11 + $0x668] sm:$0xff]
    %v498 = vld [vmem:[#allocation11 + $0x670] sm:$0xff]
    %v499 = vld [vmem:[#allocation11 + $0x678] sm:$0xff]
    %v500 = vld [vmem:[#allocation11 + $0x680] sm:$0xff]
    %v501 = vld [vmem:[#allocation11 + $0x688] sm:$0xff]
    %v502 = vld [vmem:[#allocation11 + $0x690] sm:$0xff]
    %v503 = vld [vmem:[#allocation11 + $0x698] sm:$0xff]
    %v504 = vld [vmem:[#allocation11 + $0x6a0] sm:$0xff]
    %v505 = vld [vmem:[#allocation11 + $0x6a8] sm:$0xff]
    %v506 = vld [vmem:[#allocation11 + $0x6b0] sm:$0xff]
    %v507 = vld [vmem:[#allocation11 + $0x6b8] sm:$0xff]
    %v508 = vld [vmem:[#allocation11 + $0x6c0] sm:$0xff]
    %v509 = vld [vmem:[#allocation11 + $0x6c8] sm:$0xff]
    %v510 = vld [vmem:[#allocation11 + $0x6d0] sm:$0xff]
    %v511 = vld [vmem:[#allocation11 + $0x6d8] sm:$0xff]
    %v512 = vld [vmem:[#allocation11 + $0x6e0] sm:$0xff]
    %v513 = vld [vmem:[#allocation11 + $0x6e8] sm:$0xff]
    %v514 = vld [vmem:[#allocation11 + $0x6f0] sm:$0xff]
    %v515 = vld [vmem:[#allocation11 + $0x6f8] sm:$0xff]
    %v516 = vld [vmem:[#allocation11 + $0x700] sm:$0xff]
    %v517 = vld [vmem:[#allocation11 + $0x708] sm:$0xff]
    %v518 = vld [vmem:[#allocation11 + $0x710] sm:$0xff]
    %v519 = vld [vmem:[#allocation11 + $0x718] sm:$0xff]
    %v520 = vld [vmem:[#allocation11 + $0x720] sm:$0xff]
    %v521 = vld [vmem:[#allocation11 + $0x728] sm:$0xff]
    %v522 = vld [vmem:[#allocation11 + $0x730] sm:$0xff]
    %v523 = vld [vmem:[#allocation11 + $0x738] sm:$0xff]
    %v524 = vld [vmem:[#allocation11 + $0x740] sm:$0xff]
    %v525 = vld [vmem:[#allocation11 + $0x748] sm:$0xff]
    %v526 = vld [vmem:[#allocation11 + $0x750] sm:$0xff]
    %v527 = vld [vmem:[#allocation11 + $0x758] sm:$0xff]
    %v528 = vld [vmem:[#allocation11 + $0x760] sm:$0xff]
    %v529 = vld [vmem:[#allocation11 + $0x768] sm:$0xff]
    %v530 = vld [vmem:[#allocation11 + $0x770] sm:$0xff]
    %v531 = vld [vmem:[#allocation11 + $0x778] sm:$0xff]
    %v532 = vld [vmem:[#allocation11 + $0x780] sm:$0xff]
    %v533 = vld [vmem:[#allocation11 + $0x788] sm:$0xff]
    %v534 = vld [vmem:[#allocation11 + $0x790] sm:$0xff]
    %v535 = vld [vmem:[#allocation11 + $0x798] sm:$0xff]
    %v536 = vld [vmem:[#allocation11 + $0x7a0] sm:$0xff]
    %v537 = vld [vmem:[#allocation11 + $0x7a8] sm:$0xff]
    %v538 = vld [vmem:[#allocation11 + $0x7b0] sm:$0xff]
    %v539 = vld [vmem:[#allocation11 + $0x7b8] sm:$0xff]
    %v540 = vld [vmem:[#allocation11 + $0x7c0] sm:$0xff]
    %v541 = vld [vmem:[#allocation11 + $0x7c8] sm:$0xff]
    %v542 = vld [vmem:[#allocation11 + $0x7d0] sm:$0xff]
    %v543 = vld [vmem:[#allocation11 + $0x7d8] sm:$0xff]
    %v544 = vld [vmem:[#allocation11 + $0x7e0] sm:$0xff]
    %v545 = vld [vmem:[#allocation11 + $0x7e8] sm:$0xff]
    %v546 = vld [vmem:[#allocation11 + $0x7f0] sm:$0xff]
    %v547 = vld [vmem:[#allocation11 + $0x7f8] sm:$0xff]
    %v548 = vld [vmem:[#allocation11 + $0x800] sm:$0xff]
    %v549 = vld [vmem:[#allocation11 + $0x808] sm:$0xff]
    %v550 = vld [vmem:[#allocation11 + $0x810] sm:$0xff]
    %v551 = vld [vmem:[#allocation11 + $0x818] sm:$0xff]
    %v552 = vld [vmem:[#allocation11 + $0x820] sm:$0xff]
    %v553 = vld [vmem:[#allocation11 + $0x828] sm:$0xff]
    %v554 = vld [vmem:[#allocation11 + $0x830] sm:$0xff]
    %v555 = vld [vmem:[#allocation11 + $0x838] sm:$0xff]
    %v556 = vld [vmem:[#allocation11 + $0x840] sm:$0xff]
    %v557 = vld [vmem:[#allocation11 + $0x848] sm:$0xff]
    %v558 = vld [vmem:[#allocation11 + $0x850] sm:$0xff]
    %v559 = vld [vmem:[#allocation11 + $0x858] sm:$0xff]
    %v560 = vld [vmem:[#allocation11 + $0x860] sm:$0xff]
    %v561 = vld [vmem:[#allocation11 + $0x868] sm:$0xff]
    %v562 = vld [vmem:[#allocation11 + $0x870] sm:$0xff]
    %v563 = vld [vmem:[#allocation11 + $0x878] sm:$0xff]
    %v564 = vld [vmem:[#allocation11 + $0x880] sm:$0xff]
    %v565 = vld [vmem:[#allocation11 + $0x888] sm:$0xff]
    %v566 = vld [vmem:[#allocation11 + $0x890] sm:$0xff]
    %v567 = vld [vmem:[#allocation11 + $0x898] sm:$0xff]
    %v568 = vld [vmem:[#allocation11 + $0x8a0] sm:$0xff]
    %v569 = vld [vmem:[#allocation11 + $0x8a8] sm:$0xff]
    %v570 = vld [vmem:[#allocation11 + $0x8b0] sm:$0xff]
    %v571 = vld [vmem:[#allocation11 + $0x8b8] sm:$0xff]
    %v572 = vld [vmem:[#allocation11 + $0x8c0] sm:$0xff]
    %v573 = vld [vmem:[#allocation11 + $0x8c8] sm:$0xff]
    %v574 = vld [vmem:[#allocation11 + $0x8d0] sm:$0xff]
    %v575 = vld [vmem:[#allocation11 + $0x8d8] sm:$0xff]
    %v576 = vld [vmem:[#allocation11 + $0x8e0] sm:$0xff]
    %v577 = vld [vmem:[#allocation11 + $0x8e8] sm:$0xff]
    %v578 = vld [vmem:[#allocation11 + $0x8f0] sm:$0xff]
    %v579 = vld [vmem:[#allocation11 + $0x8f8] sm:$0xff]
    %v580 = vld [vmem:[#allocation13] sm:$0x3]
    %v582 = vlaneseq
    %v583 = vshrl.u32 %v582, 7
    %v584 = vsub.s32 0, %v583
    %v585 = vrot.slane %v580, %v584
    %v586 = vlaneseq
    %v587 = vshrl.u32 %v586, 7
    %v588 = vsub.s32 1, %v587
    %v589 = vrot.slane %v580, %v588
    %v601 = vunpack.c.l.b16 %v283
    %v602 = vunpack.c.h.b16 %v283
    %v603 = vunpack.c.l.b16 %v284
    %v604 = vunpack.c.h.b16 %v284
    %v605 = vunpack.c.l.b16 %v285
    %v606 = vunpack.c.h.b16 %v285
    %v607 = vunpack.c.l.b16 %v286
    %v608 = vunpack.c.h.b16 %v286
    %v609 = vunpack.c.l.b16 %v287
    %v610 = vunpack.c.h.b16 %v287
    %v611 = vunpack.c.l.b16 %v288
    %v612 = vunpack.c.h.b16 %v288
    %v613 = vunpack.c.l.b16 %v289
    %v614 = vunpack.c.h.b16 %v289
    %v615 = vunpack.c.l.b16 %v290
    %v616 = vunpack.c.h.b16 %v290
    %v617 = vunpack.c.l.b16 %v291
    %v618 = vunpack.c.h.b16 %v291
    %v619 = vpack.c.b16 %v601, %v601
    %v620 = vpack.c.b16 %v602, %v602
    %v621 = vpack.c.b16 %v603, %v603
    %v622 = vpack.c.b16 %v604, %v604
    %v623 = vpack.c.b16 %v605, %v605
    %v624 = vpack.c.b16 %v606, %v606
    %v625 = vpack.c.b16 %v607, %v607
    %v626 = vpack.c.b16 %v608, %v608
    %v627 = vpack.c.b16 %v609, %v609
    %v628 = vpack.c.b16 %v610, %v610
    %v629 = vpack.c.b16 %v611, %v611
    %v630 = vpack.c.b16 %v612, %v612
    %v631 = vpack.c.b16 %v613, %v613
    %v632 = vpack.c.b16 %v614, %v614
    %v633 = vpack.c.b16 %v615, %v615
    %v634 = vpack.c.b16 %v616, %v616
    %v635 = vpack.c.b16 %v617, %v617
    %v636 = vpack.c.b16 %v618, %v618
    %v943 = vunpack.c.l.b16 %v292
    %v944 = vunpack.c.h.b16 %v292
    %v945 = vunpack.c.l.b16 %v293
    %v946 = vunpack.c.h.b16 %v293
    %v947 = vunpack.c.l.b16 %v294
    %v948 = vunpack.c.h.b16 %v294
    %v949 = vunpack.c.l.b16 %v295
    %v950 = vunpack.c.h.b16 %v295
    %v951 = vunpack.c.l.b16 %v296
    %v952 = vunpack.c.h.b16 %v296
    %v953 = vunpack.c.l.b16 %v297
    %v954 = vunpack.c.h.b16 %v297
    %v955 = vunpack.c.l.b16 %v298
    %v956 = vunpack.c.h.b16 %v298
    %v957 = vunpack.c.l.b16 %v299
    %v958 = vunpack.c.h.b16 %v299
    %v959 = vunpack.c.l.b16 %v300
    %v960 = vunpack.c.h.b16 %v300
    %v961 = vunpack.c.l.b16 %v301
    %v962 = vunpack.c.h.b16 %v301
    %v963 = vunpack.c.l.b16 %v302
    %v964 = vunpack.c.h.b16 %v302
    %v965 = vunpack.c.l.b16 %v303
    %v966 = vunpack.c.h.b16 %v303
    %v967 = vunpack.c.l.b16 %v304
    %v968 = vunpack.c.h.b16 %v304
    %v969 = vunpack.c.l.b16 %v305
    %v970 = vunpack.c.h.b16 %v305
    %v971 = vunpack.c.l.b16 %v306
    %v972 = vunpack.c.h.b16 %v306
    %v973 = vunpack.c.l.b16 %v307
    %v974 = vunpack.c.h.b16 %v307
    %v975 = vunpack.c.l.b16 %v308
    %v976 = vunpack.c.h.b16 %v308
    %v977 = vunpack.c.l.b16 %v309
    %v978 = vunpack.c.h.b16 %v309
    %v979 = vunpack.c.l.b16 %v310
    %v980 = vunpack.c.h.b16 %v310
    %v981 = vunpack.c.l.b16 %v311
    %v982 = vunpack.c.h.b16 %v311
    %v983 = vunpack.c.l.b16 %v312
    %v984 = vunpack.c.h.b16 %v312
    %v985 = vunpack.c.l.b16 %v313
    %v986 = vunpack.c.h.b16 %v313
    %v987 = vunpack.c.l.b16 %v314
    %v988 = vunpack.c.h.b16 %v314
    %v989 = vunpack.c.l.b16 %v315
    %v990 = vunpack.c.h.b16 %v315
    %v991 = vunpack.c.l.b16 %v316
    %v992 = vunpack.c.h.b16 %v316
    %v993 = vunpack.c.l.b16 %v317
    %v994 = vunpack.c.h.b16 %v317
    %v995 = vunpack.c.l.b16 %v318
    %v996 = vunpack.c.h.b16 %v318
    %v997 = vunpack.c.l.b16 %v319
    %v998 = vunpack.c.h.b16 %v319
    %v999 = vunpack.c.l.b16 %v320
    %v1000 = vunpack.c.h.b16 %v320
    %v1001 = vunpack.c.l.b16 %v321
    %v1002 = vunpack.c.h.b16 %v321
    %v1003 = vunpack.c.l.b16 %v322
    %v1004 = vunpack.c.h.b16 %v322
    %v1005 = vunpack.c.l.b16 %v323
    %v1006 = vunpack.c.h.b16 %v323
    %v1007 = vunpack.c.l.b16 %v324
    %v1008 = vunpack.c.h.b16 %v324
    %v1009 = vunpack.c.l.b16 %v325
    %v1010 = vunpack.c.h.b16 %v325
    %v1011 = vunpack.c.l.b16 %v326
    %v1012 = vunpack.c.h.b16 %v326
    %v1013 = vunpack.c.l.b16 %v327
    %v1014 = vunpack.c.h.b16 %v327
    %v1015 = vunpack.c.l.b16 %v328
    %v1016 = vunpack.c.h.b16 %v328
    %v1017 = vunpack.c.l.b16 %v329
    %v1018 = vunpack.c.h.b16 %v329
    %v1019 = vunpack.c.l.b16 %v330
    %v1020 = vunpack.c.h.b16 %v330
    %v1021 = vunpack.c.l.b16 %v331
    %v1022 = vunpack.c.h.b16 %v331
    %v1023 = vunpack.c.l.b16 %v332
    %v1024 = vunpack.c.h.b16 %v332
    %v1025 = vunpack.c.l.b16 %v333
    %v1026 = vunpack.c.h.b16 %v333
    %v1027 = vunpack.c.l.b16 %v334
    %v1028 = vunpack.c.h.b16 %v334
    %v1029 = vunpack.c.l.b16 %v335
    %v1030 = vunpack.c.h.b16 %v335
    %v1031 = vunpack.c.l.b16 %v336
    %v1032 = vunpack.c.h.b16 %v336
    %v1033 = vunpack.c.l.b16 %v337
    %v1034 = vunpack.c.h.b16 %v337
    %v1035 = vunpack.c.l.b16 %v338
    %v1036 = vunpack.c.h.b16 %v338
    %v1037 = vunpack.c.l.b16 %v339
    %v1038 = vunpack.c.h.b16 %v339
    %v1039 = vunpack.c.l.b16 %v340
    %v1040 = vunpack.c.h.b16 %v340
    %v1041 = vunpack.c.l.b16 %v341
    %v1042 = vunpack.c.h.b16 %v341
    %v1043 = vunpack.c.l.b16 %v342
    %v1044 = vunpack.c.h.b16 %v342
    %v1045 = vunpack.c.l.b16 %v343
    %v1046 = vunpack.c.h.b16 %v343
    %v1047 = vunpack.c.l.b16 %v344
    %v1048 = vunpack.c.h.b16 %v344
    %v1049 = vunpack.c.l.b16 %v345
    %v1050 = vunpack.c.h.b16 %v345
    %v1051 = vunpack.c.l.b16 %v346
    %v1052 = vunpack.c.h.b16 %v346
    %v1053 = vunpack.c.l.b16 %v347
    %v1054 = vunpack.c.h.b16 %v347
    %v1055 = vunpack.c.l.b16 %v348
    %v1056 = vunpack.c.h.b16 %v348
    %v1057 = vunpack.c.l.b16 %v349
    %v1058 = vunpack.c.h.b16 %v349
    %v1059 = vunpack.c.l.b16 %v350
    %v1060 = vunpack.c.h.b16 %v350
    %v1061 = vunpack.c.l.b16 %v351
    %v1062 = vunpack.c.h.b16 %v351
    %v1063 = vunpack.c.l.b16 %v352
    %v1064 = vunpack.c.h.b16 %v352
    %v1065 = vunpack.c.l.b16 %v353
    %v1066 = vunpack.c.h.b16 %v353
    %v1067 = vunpack.c.l.b16 %v354
    %v1068 = vunpack.c.h.b16 %v354
    %v1069 = vunpack.c.l.b16 %v355
    %v1070 = vunpack.c.h.b16 %v355
    %v1071 = vunpack.c.l.b16 %v356
    %v1072 = vunpack.c.h.b16 %v356
    %v1073 = vunpack.c.l.b16 %v357
    %v1074 = vunpack.c.h.b16 %v357
    %v1075 = vunpack.c.l.b16 %v358
    %v1076 = vunpack.c.h.b16 %v358
    %v1077 = vunpack.c.l.b16 %v359
    %v1078 = vunpack.c.h.b16 %v359
    %v1079 = vunpack.c.l.b16 %v360
    %v1080 = vunpack.c.h.b16 %v360
    %v1081 = vunpack.c.l.b16 %v361
    %v1082 = vunpack.c.h.b16 %v361
    %v1083 = vunpack.c.l.b16 %v362
    %v1084 = vunpack.c.h.b16 %v362
    %v1085 = vunpack.c.l.b16 %v363
    %v1086 = vunpack.c.h.b16 %v363
    %v1087 = vunpack.c.l.b16 %v364
    %v1088 = vunpack.c.h.b16 %v364
    %v1089 = vunpack.c.l.b16 %v365
    %v1090 = vunpack.c.h.b16 %v365
    %v1091 = vunpack.c.l.b16 %v366
    %v1092 = vunpack.c.h.b16 %v366
    %v1093 = vunpack.c.l.b16 %v367
    %v1094 = vunpack.c.h.b16 %v367
    %v1095 = vunpack.c.l.b16 %v368
    %v1096 = vunpack.c.h.b16 %v368
    %v1097 = vunpack.c.l.b16 %v369
    %v1098 = vunpack.c.h.b16 %v369
    %v1099 = vunpack.c.l.b16 %v370
    %v1100 = vunpack.c.h.b16 %v370
    %v1101 = vunpack.c.l.b16 %v371
    %v1102 = vunpack.c.h.b16 %v371
    %v1103 = vunpack.c.l.b16 %v372
    %v1104 = vunpack.c.h.b16 %v372
    %v1105 = vunpack.c.l.b16 %v373
    %v1106 = vunpack.c.h.b16 %v373
    %v1107 = vunpack.c.l.b16 %v374
    %v1108 = vunpack.c.h.b16 %v374
    %v1109 = vunpack.c.l.b16 %v375
    %v1110 = vunpack.c.h.b16 %v375
    %v1111 = vunpack.c.l.b16 %v376
    %v1112 = vunpack.c.h.b16 %v376
    %v1113 = vunpack.c.l.b16 %v377
    %v1114 = vunpack.c.h.b16 %v377
    %v1115 = vunpack.c.l.b16 %v378
    %v1116 = vunpack.c.h.b16 %v378
    %v1117 = vunpack.c.l.b16 %v379
    %v1118 = vunpack.c.h.b16 %v379
    %v1119 = vunpack.c.l.b16 %v380
    %v1120 = vunpack.c.h.b16 %v380
    %v1121 = vunpack.c.l.b16 %v381
    %v1122 = vunpack.c.h.b16 %v381
    %v1123 = vunpack.c.l.b16 %v382
    %v1124 = vunpack.c.h.b16 %v382
    %v1125 = vunpack.c.l.b16 %v383
    %v1126 = vunpack.c.h.b16 %v383
    %v1127 = vunpack.c.l.b16 %v384
    %v1128 = vunpack.c.h.b16 %v384
    %v1129 = vunpack.c.l.b16 %v385
    %v1130 = vunpack.c.h.b16 %v385
    %v1131 = vunpack.c.l.b16 %v386
    %v1132 = vunpack.c.h.b16 %v386
    %v1133 = vunpack.c.l.b16 %v387
    %v1134 = vunpack.c.h.b16 %v387
    %v1135 = vunpack.c.l.b16 %v388
    %v1136 = vunpack.c.h.b16 %v388
    %v1137 = vunpack.c.l.b16 %v389
    %v1138 = vunpack.c.h.b16 %v389
    %v1139 = vunpack.c.l.b16 %v390
    %v1140 = vunpack.c.h.b16 %v390
    %v1141 = vunpack.c.l.b16 %v391
    %v1142 = vunpack.c.h.b16 %v391
    %v1143 = vunpack.c.l.b16 %v392
    %v1144 = vunpack.c.h.b16 %v392
    %v1145 = vunpack.c.l.b16 %v393
    %v1146 = vunpack.c.h.b16 %v393
    %v1147 = vunpack.c.l.b16 %v394
    %v1148 = vunpack.c.h.b16 %v394
    %v1149 = vunpack.c.l.b16 %v395
    %v1150 = vunpack.c.h.b16 %v395
    %v1151 = vunpack.c.l.b16 %v396
    %v1152 = vunpack.c.h.b16 %v396
    %v1153 = vunpack.c.l.b16 %v397
    %v1154 = vunpack.c.h.b16 %v397
    %v1155 = vunpack.c.l.b16 %v398
    %v1156 = vunpack.c.h.b16 %v398
    %v1157 = vunpack.c.l.b16 %v399
    %v1158 = vunpack.c.h.b16 %v399
    %v1159 = vunpack.c.l.b16 %v400
    %v1160 = vunpack.c.h.b16 %v400
    %v1161 = vunpack.c.l.b16 %v401
    %v1162 = vunpack.c.h.b16 %v401
    %v1163 = vunpack.c.l.b16 %v402
    %v1164 = vunpack.c.h.b16 %v402
    %v1165 = vunpack.c.l.b16 %v403
    %v1166 = vunpack.c.h.b16 %v403
    %v1167 = vunpack.c.l.b16 %v404
    %v1168 = vunpack.c.h.b16 %v404
    %v1169 = vunpack.c.l.b16 %v405
    %v1170 = vunpack.c.h.b16 %v405
    %v1171 = vunpack.c.l.b16 %v406
    %v1172 = vunpack.c.h.b16 %v406
    %v1173 = vunpack.c.l.b16 %v407
    %v1174 = vunpack.c.h.b16 %v407
    %v1175 = vunpack.c.l.b16 %v408
    %v1176 = vunpack.c.h.b16 %v408
    %v1177 = vunpack.c.l.b16 %v409
    %v1178 = vunpack.c.h.b16 %v409
    %v1179 = vunpack.c.l.b16 %v410
    %v1180 = vunpack.c.h.b16 %v410
    %v1181 = vunpack.c.l.b16 %v411
    %v1182 = vunpack.c.h.b16 %v411
    %v1183 = vunpack.c.l.b16 %v412
    %v1184 = vunpack.c.h.b16 %v412
    %v1185 = vunpack.c.l.b16 %v413
    %v1186 = vunpack.c.h.b16 %v413
    %v1187 = vunpack.c.l.b16 %v414
    %v1188 = vunpack.c.h.b16 %v414
    %v1189 = vunpack.c.l.b16 %v415
    %v1190 = vunpack.c.h.b16 %v415
    %v1191 = vunpack.c.l.b16 %v416
    %v1192 = vunpack.c.h.b16 %v416
    %v1193 = vunpack.c.l.b16 %v417
    %v1194 = vunpack.c.h.b16 %v417
    %v1195 = vunpack.c.l.b16 %v418
    %v1196 = vunpack.c.h.b16 %v418
    %v1197 = vunpack.c.l.b16 %v419
    %v1198 = vunpack.c.h.b16 %v419
    %v1199 = vunpack.c.l.b16 %v420
    %v1200 = vunpack.c.h.b16 %v420
    %v1201 = vunpack.c.l.b16 %v421
    %v1202 = vunpack.c.h.b16 %v421
    %v1203 = vunpack.c.l.b16 %v422
    %v1204 = vunpack.c.h.b16 %v422
    %v1205 = vunpack.c.l.b16 %v423
    %v1206 = vunpack.c.h.b16 %v423
    %v1207 = vunpack.c.l.b16 %v424
    %v1208 = vunpack.c.h.b16 %v424
    %v1209 = vunpack.c.l.b16 %v425
    %v1210 = vunpack.c.h.b16 %v425
    %v1211 = vunpack.c.l.b16 %v426
    %v1212 = vunpack.c.h.b16 %v426
    %v1213 = vunpack.c.l.b16 %v427
    %v1214 = vunpack.c.h.b16 %v427
    %v1215 = vunpack.c.l.b16 %v428
    %v1216 = vunpack.c.h.b16 %v428
    %v1217 = vunpack.c.l.b16 %v429
    %v1218 = vunpack.c.h.b16 %v429
    %v1219 = vunpack.c.l.b16 %v430
    %v1220 = vunpack.c.h.b16 %v430
    %v1221 = vunpack.c.l.b16 %v431
    %v1222 = vunpack.c.h.b16 %v431
    %v1223 = vunpack.c.l.b16 %v432
    %v1224 = vunpack.c.h.b16 %v432
    %v1225 = vunpack.c.l.b16 %v433
    %v1226 = vunpack.c.h.b16 %v433
    %v1227 = vunpack.c.l.b16 %v434
    %v1228 = vunpack.c.h.b16 %v434
    %v1229 = vunpack.c.l.b16 %v435
    %v1230 = vunpack.c.h.b16 %v435
    %v1231 = vunpack.c.l.b16 %v436
    %v1232 = vunpack.c.h.b16 %v436
    %v1233 = vunpack.c.l.b16 %v437
    %v1234 = vunpack.c.h.b16 %v437
    %v1235 = vunpack.c.l.b16 %v438
    %v1236 = vunpack.c.h.b16 %v438
    %v1237 = vunpack.c.l.b16 %v439
    %v1238 = vunpack.c.h.b16 %v439
    %v1239 = vunpack.c.l.b16 %v440
    %v1240 = vunpack.c.h.b16 %v440
    %v1241 = vunpack.c.l.b16 %v441
    %v1242 = vunpack.c.h.b16 %v441
    %v1243 = vunpack.c.l.b16 %v442
    %v1244 = vunpack.c.h.b16 %v442
    %v1245 = vunpack.c.l.b16 %v443
    %v1246 = vunpack.c.h.b16 %v443
    %v1247 = vunpack.c.l.b16 %v444
    %v1248 = vunpack.c.h.b16 %v444
    %v1249 = vunpack.c.l.b16 %v445
    %v1250 = vunpack.c.h.b16 %v445
    %v1251 = vunpack.c.l.b16 %v446
    %v1252 = vunpack.c.h.b16 %v446
    %v1253 = vunpack.c.l.b16 %v447
    %v1254 = vunpack.c.h.b16 %v447
    %v1255 = vunpack.c.l.b16 %v448
    %v1256 = vunpack.c.h.b16 %v448
    %v1257 = vunpack.c.l.b16 %v449
    %v1258 = vunpack.c.h.b16 %v449
    %v1259 = vunpack.c.l.b16 %v450
    %v1260 = vunpack.c.h.b16 %v450
    %v1261 = vunpack.c.l.b16 %v451
    %v1262 = vunpack.c.h.b16 %v451
    %v1263 = vunpack.c.l.b16 %v452
    %v1264 = vunpack.c.h.b16 %v452
    %v1265 = vunpack.c.l.b16 %v453
    %v1266 = vunpack.c.h.b16 %v453
    %v1267 = vunpack.c.l.b16 %v454
    %v1268 = vunpack.c.h.b16 %v454
    %v1269 = vunpack.c.l.b16 %v455
    %v1270 = vunpack.c.h.b16 %v455
    %v1271 = vunpack.c.l.b16 %v456
    %v1272 = vunpack.c.h.b16 %v456
    %v1273 = vunpack.c.l.b16 %v457
    %v1274 = vunpack.c.h.b16 %v457
    %v1275 = vunpack.c.l.b16 %v458
    %v1276 = vunpack.c.h.b16 %v458
    %v1277 = vunpack.c.l.b16 %v459
    %v1278 = vunpack.c.h.b16 %v459
    %v1279 = vunpack.c.l.b16 %v460
    %v1280 = vunpack.c.h.b16 %v460
    %v1281 = vunpack.c.l.b16 %v461
    %v1282 = vunpack.c.h.b16 %v461
    %v1283 = vunpack.c.l.b16 %v462
    %v1284 = vunpack.c.h.b16 %v462
    %v1285 = vunpack.c.l.b16 %v463
    %v1286 = vunpack.c.h.b16 %v463
    %v1287 = vunpack.c.l.b16 %v464
    %v1288 = vunpack.c.h.b16 %v464
    %v1289 = vunpack.c.l.b16 %v465
    %v1290 = vunpack.c.h.b16 %v465
    %v1291 = vunpack.c.l.b16 %v466
    %v1292 = vunpack.c.h.b16 %v466
    %v1293 = vunpack.c.l.b16 %v467
    %v1294 = vunpack.c.h.b16 %v467
    %v1295 = vunpack.c.l.b16 %v468
    %v1296 = vunpack.c.h.b16 %v468
    %v1297 = vunpack.c.l.b16 %v469
    %v1298 = vunpack.c.h.b16 %v469
    %v1299 = vunpack.c.l.b16 %v470
    %v1300 = vunpack.c.h.b16 %v470
    %v1301 = vunpack.c.l.b16 %v471
    %v1302 = vunpack.c.h.b16 %v471
    %v1303 = vunpack.c.l.b16 %v472
    %v1304 = vunpack.c.h.b16 %v472
    %v1305 = vunpack.c.l.b16 %v473
    %v1306 = vunpack.c.h.b16 %v473
    %v1307 = vunpack.c.l.b16 %v474
    %v1308 = vunpack.c.h.b16 %v474
    %v1309 = vunpack.c.l.b16 %v475
    %v1310 = vunpack.c.h.b16 %v475
    %v1311 = vunpack.c.l.b16 %v476
    %v1312 = vunpack.c.h.b16 %v476
    %v1313 = vunpack.c.l.b16 %v477
    %v1314 = vunpack.c.h.b16 %v477
    %v1315 = vunpack.c.l.b16 %v478
    %v1316 = vunpack.c.h.b16 %v478
    %v1317 = vunpack.c.l.b16 %v479
    %v1318 = vunpack.c.h.b16 %v479
    %v1319 = vunpack.c.l.b16 %v480
    %v1320 = vunpack.c.h.b16 %v480
    %v1321 = vunpack.c.l.b16 %v481
    %v1322 = vunpack.c.h.b16 %v481
    %v1323 = vunpack.c.l.b16 %v482
    %v1324 = vunpack.c.h.b16 %v482
    %v1325 = vunpack.c.l.b16 %v483
    %v1326 = vunpack.c.h.b16 %v483
    %v1327 = vunpack.c.l.b16 %v484
    %v1328 = vunpack.c.h.b16 %v484
    %v1329 = vunpack.c.l.b16 %v485
    %v1330 = vunpack.c.h.b16 %v485
    %v1331 = vunpack.c.l.b16 %v486
    %v1332 = vunpack.c.h.b16 %v486
    %v1333 = vunpack.c.l.b16 %v487
    %v1334 = vunpack.c.h.b16 %v487
    %v1335 = vunpack.c.l.b16 %v488
    %v1336 = vunpack.c.h.b16 %v488
    %v1337 = vunpack.c.l.b16 %v489
    %v1338 = vunpack.c.h.b16 %v489
    %v1339 = vunpack.c.l.b16 %v490
    %v1340 = vunpack.c.h.b16 %v490
    %v1341 = vunpack.c.l.b16 %v491
    %v1342 = vunpack.c.h.b16 %v491
    %v1343 = vunpack.c.l.b16 %v492
    %v1344 = vunpack.c.h.b16 %v492
    %v1345 = vunpack.c.l.b16 %v493
    %v1346 = vunpack.c.h.b16 %v493
    %v1347 = vunpack.c.l.b16 %v494
    %v1348 = vunpack.c.h.b16 %v494
    %v1349 = vunpack.c.l.b16 %v495
    %v1350 = vunpack.c.h.b16 %v495
    %v1351 = vunpack.c.l.b16 %v496
    %v1352 = vunpack.c.h.b16 %v496
    %v1353 = vunpack.c.l.b16 %v497
    %v1354 = vunpack.c.h.b16 %v497
    %v1355 = vunpack.c.l.b16 %v498
    %v1356 = vunpack.c.h.b16 %v498
    %v1357 = vunpack.c.l.b16 %v499
    %v1358 = vunpack.c.h.b16 %v499
    %v1359 = vunpack.c.l.b16 %v500
    %v1360 = vunpack.c.h.b16 %v500
    %v1361 = vunpack.c.l.b16 %v501
    %v1362 = vunpack.c.h.b16 %v501
    %v1363 = vunpack.c.l.b16 %v502
    %v1364 = vunpack.c.h.b16 %v502
    %v1365 = vunpack.c.l.b16 %v503
    %v1366 = vunpack.c.h.b16 %v503
    %v1367 = vunpack.c.l.b16 %v504
    %v1368 = vunpack.c.h.b16 %v504
    %v1369 = vunpack.c.l.b16 %v505
    %v1370 = vunpack.c.h.b16 %v505
    %v1371 = vunpack.c.l.b16 %v506
    %v1372 = vunpack.c.h.b16 %v506
    %v1373 = vunpack.c.l.b16 %v507
    %v1374 = vunpack.c.h.b16 %v507
    %v1375 = vunpack.c.l.b16 %v508
    %v1376 = vunpack.c.h.b16 %v508
    %v1377 = vunpack.c.l.b16 %v509
    %v1378 = vunpack.c.h.b16 %v509
    %v1379 = vunpack.c.l.b16 %v510
    %v1380 = vunpack.c.h.b16 %v510
    %v1381 = vunpack.c.l.b16 %v511
    %v1382 = vunpack.c.h.b16 %v511
    %v1383 = vunpack.c.l.b16 %v512
    %v1384 = vunpack.c.h.b16 %v512
    %v1385 = vunpack.c.l.b16 %v513
    %v1386 = vunpack.c.h.b16 %v513
    %v1387 = vunpack.c.l.b16 %v514
    %v1388 = vunpack.c.h.b16 %v514
    %v1389 = vunpack.c.l.b16 %v515
    %v1390 = vunpack.c.h.b16 %v515
    %v1391 = vunpack.c.l.b16 %v516
    %v1392 = vunpack.c.h.b16 %v516
    %v1393 = vunpack.c.l.b16 %v517
    %v1394 = vunpack.c.h.b16 %v517
    %v1395 = vunpack.c.l.b16 %v518
    %v1396 = vunpack.c.h.b16 %v518
    %v1397 = vunpack.c.l.b16 %v519
    %v1398 = vunpack.c.h.b16 %v519
    %v1399 = vunpack.c.l.b16 %v520
    %v1400 = vunpack.c.h.b16 %v520
    %v1401 = vunpack.c.l.b16 %v521
    %v1402 = vunpack.c.h.b16 %v521
    %v1403 = vunpack.c.l.b16 %v522
    %v1404 = vunpack.c.h.b16 %v522
    %v1405 = vunpack.c.l.b16 %v523
    %v1406 = vunpack.c.h.b16 %v523
    %v1407 = vunpack.c.l.b16 %v524
    %v1408 = vunpack.c.h.b16 %v524
    %v1409 = vunpack.c.l.b16 %v525
    %v1410 = vunpack.c.h.b16 %v525
    %v1411 = vunpack.c.l.b16 %v526
    %v1412 = vunpack.c.h.b16 %v526
    %v1413 = vunpack.c.l.b16 %v527
    %v1414 = vunpack.c.h.b16 %v527
    %v1415 = vunpack.c.l.b16 %v528
    %v1416 = vunpack.c.h.b16 %v528
    %v1417 = vunpack.c.l.b16 %v529
    %v1418 = vunpack.c.h.b16 %v529
    %v1419 = vunpack.c.l.b16 %v530
    %v1420 = vunpack.c.h.b16 %v530
    %v1421 = vunpack.c.l.b16 %v531
    %v1422 = vunpack.c.h.b16 %v531
    %v1423 = vunpack.c.l.b16 %v532
    %v1424 = vunpack.c.h.b16 %v532
    %v1425 = vunpack.c.l.b16 %v533
    %v1426 = vunpack.c.h.b16 %v533
    %v1427 = vunpack.c.l.b16 %v534
    %v1428 = vunpack.c.h.b16 %v534
    %v1429 = vunpack.c.l.b16 %v535
    %v1430 = vunpack.c.h.b16 %v535
    %v1431 = vunpack.c.l.b16 %v536
    %v1432 = vunpack.c.h.b16 %v536
    %v1433 = vunpack.c.l.b16 %v537
    %v1434 = vunpack.c.h.b16 %v537
    %v1435 = vunpack.c.l.b16 %v538
    %v1436 = vunpack.c.h.b16 %v538
    %v1437 = vunpack.c.l.b16 %v539
    %v1438 = vunpack.c.h.b16 %v539
    %v1439 = vunpack.c.l.b16 %v540
    %v1440 = vunpack.c.h.b16 %v540
    %v1441 = vunpack.c.l.b16 %v541
    %v1442 = vunpack.c.h.b16 %v541
    %v1443 = vunpack.c.l.b16 %v542
    %v1444 = vunpack.c.h.b16 %v542
    %v1445 = vunpack.c.l.b16 %v543
    %v1446 = vunpack.c.h.b16 %v543
    %v1447 = vunpack.c.l.b16 %v544
    %v1448 = vunpack.c.h.b16 %v544
    %v1449 = vunpack.c.l.b16 %v545
    %v1450 = vunpack.c.h.b16 %v545
    %v1451 = vunpack.c.l.b16 %v546
    %v1452 = vunpack.c.h.b16 %v546
    %v1453 = vunpack.c.l.b16 %v547
    %v1454 = vunpack.c.h.b16 %v547
    %v1455 = vunpack.c.l.b16 %v548
    %v1456 = vunpack.c.h.b16 %v548
    %v1457 = vunpack.c.l.b16 %v549
    %v1458 = vunpack.c.h.b16 %v549
    %v1459 = vunpack.c.l.b16 %v550
    %v1460 = vunpack.c.h.b16 %v550
    %v1461 = vunpack.c.l.b16 %v551
    %v1462 = vunpack.c.h.b16 %v551
    %v1463 = vunpack.c.l.b16 %v552
    %v1464 = vunpack.c.h.b16 %v552
    %v1465 = vunpack.c.l.b16 %v553
    %v1466 = vunpack.c.h.b16 %v553
    %v1467 = vunpack.c.l.b16 %v554
    %v1468 = vunpack.c.h.b16 %v554
    %v1469 = vunpack.c.l.b16 %v555
    %v1470 = vunpack.c.h.b16 %v555
    %v1471 = vunpack.c.l.b16 %v556
    %v1472 = vunpack.c.h.b16 %v556
    %v1473 = vunpack.c.l.b16 %v557
    %v1474 = vunpack.c.h.b16 %v557
    %v1475 = vunpack.c.l.b16 %v558
    %v1476 = vunpack.c.h.b16 %v558
    %v1477 = vunpack.c.l.b16 %v559
    %v1478 = vunpack.c.h.b16 %v559
    %v1479 = vunpack.c.l.b16 %v560
    %v1480 = vunpack.c.h.b16 %v560
    %v1481 = vunpack.c.l.b16 %v561
    %v1482 = vunpack.c.h.b16 %v561
    %v1483 = vunpack.c.l.b16 %v562
    %v1484 = vunpack.c.h.b16 %v562
    %v1485 = vunpack.c.l.b16 %v563
    %v1486 = vunpack.c.h.b16 %v563
    %v1487 = vunpack.c.l.b16 %v564
    %v1488 = vunpack.c.h.b16 %v564
    %v1489 = vunpack.c.l.b16 %v565
    %v1490 = vunpack.c.h.b16 %v565
    %v1491 = vunpack.c.l.b16 %v566
    %v1492 = vunpack.c.h.b16 %v566
    %v1493 = vunpack.c.l.b16 %v567
    %v1494 = vunpack.c.h.b16 %v567
    %v1495 = vunpack.c.l.b16 %v568
    %v1496 = vunpack.c.h.b16 %v568
    %v1497 = vunpack.c.l.b16 %v569
    %v1498 = vunpack.c.h.b16 %v569
    %v1499 = vunpack.c.l.b16 %v570
    %v1500 = vunpack.c.h.b16 %v570
    %v1501 = vunpack.c.l.b16 %v571
    %v1502 = vunpack.c.h.b16 %v571
    %v1503 = vunpack.c.l.b16 %v572
    %v1504 = vunpack.c.h.b16 %v572
    %v1505 = vunpack.c.l.b16 %v573
    %v1506 = vunpack.c.h.b16 %v573
    %v1507 = vunpack.c.l.b16 %v574
    %v1508 = vunpack.c.h.b16 %v574
    %v1509 = vunpack.c.l.b16 %v575
    %v1510 = vunpack.c.h.b16 %v575
    %v1511 = vunpack.c.l.b16 %v576
    %v1512 = vunpack.c.h.b16 %v576
    %v1513 = vunpack.c.l.b16 %v577
    %v1514 = vunpack.c.h.b16 %v577
    %v1515 = vunpack.c.l.b16 %v578
    %v1516 = vunpack.c.h.b16 %v578
    %v1517 = vunpack.c.l.b16 %v579
    %v1518 = vunpack.c.h.b16 %v579
    %v1519 = vpack.c.b16 %v945, %v943
    %v1520 = vpack.c.b16 %v946, %v944
    %v1521 = vpack.c.b16 %v949, %v947
    %v1522 = vpack.c.b16 %v950, %v948
    %v1523 = vpack.c.b16 %v953, %v951
    %v1524 = vpack.c.b16 %v954, %v952
    %v1525 = vpack.c.b16 %v957, %v955
    %v1526 = vpack.c.b16 %v958, %v956
    %v1527 = vpack.c.b16 %v961, %v959
    %v1528 = vpack.c.b16 %v962, %v960
    %v1529 = vpack.c.b16 %v965, %v963
    %v1530 = vpack.c.b16 %v966, %v964
    %v1531 = vpack.c.b16 %v969, %v967
    %v1532 = vpack.c.b16 %v970, %v968
    %v1533 = vpack.c.b16 %v973, %v971
    %v1534 = vpack.c.b16 %v974, %v972
    %v1535 = vpack.c.b16 %v977, %v975
    %v1536 = vpack.c.b16 %v978, %v976
    %v1537 = vpack.c.b16 %v981, %v979
    %v1538 = vpack.c.b16 %v982, %v980
    %v1539 = vpack.c.b16 %v985, %v983
    %v1540 = vpack.c.b16 %v986, %v984
    %v1541 = vpack.c.b16 %v989, %v987
    %v1542 = vpack.c.b16 %v990, %v988
    %v1543 = vpack.c.b16 %v993, %v991
    %v1544 = vpack.c.b16 %v994, %v992
    %v1545 = vpack.c.b16 %v997, %v995
    %v1546 = vpack.c.b16 %v998, %v996
    %v1547 = vpack.c.b16 %v1001, %v999
    %v1548 = vpack.c.b16 %v1002, %v1000
    %v1549 = vpack.c.b16 %v1005, %v1003
    %v1550 = vpack.c.b16 %v1006, %v1004
    %v1551 = vpack.c.b16 %v1009, %v1007
    %v1552 = vpack.c.b16 %v1010, %v1008
    %v1553 = vpack.c.b16 %v1013, %v1011
    %v1554 = vpack.c.b16 %v1014, %v1012
    %v1555 = vpack.c.b16 %v1017, %v1015
    %v1556 = vpack.c.b16 %v1018, %v1016
    %v1557 = vpack.c.b16 %v1021, %v1019
    %v1558 = vpack.c.b16 %v1022, %v1020
    %v1559 = vpack.c.b16 %v1025, %v1023
    %v1560 = vpack.c.b16 %v1026, %v1024
    %v1561 = vpack.c.b16 %v1029, %v1027
    %v1562 = vpack.c.b16 %v1030, %v1028
    %v1563 = vpack.c.b16 %v1033, %v1031
    %v1564 = vpack.c.b16 %v1034, %v1032
    %v1565 = vpack.c.b16 %v1037, %v1035
    %v1566 = vpack.c.b16 %v1038, %v1036
    %v1567 = vpack.c.b16 %v1041, %v1039
    %v1568 = vpack.c.b16 %v1042, %v1040
    %v1569 = vpack.c.b16 %v1045, %v1043
    %v1570 = vpack.c.b16 %v1046, %v1044
    %v1571 = vpack.c.b16 %v1049, %v1047
    %v1572 = vpack.c.b16 %v1050, %v1048
    %v1573 = vpack.c.b16 %v1053, %v1051
    %v1574 = vpack.c.b16 %v1054, %v1052
    %v1575 = vpack.c.b16 %v1057, %v1055
    %v1576 = vpack.c.b16 %v1058, %v1056
    %v1577 = vpack.c.b16 %v1061, %v1059
    %v1578 = vpack.c.b16 %v1062, %v1060
    %v1579 = vpack.c.b16 %v1065, %v1063
    %v1580 = vpack.c.b16 %v1066, %v1064
    %v1581 = vpack.c.b16 %v1069, %v1067
    %v1582 = vpack.c.b16 %v1070, %v1068
    %v1583 = vpack.c.b16 %v1073, %v1071
    %v1584 = vpack.c.b16 %v1074, %v1072
    %v1585 = vpack.c.b16 %v1077, %v1075
    %v1586 = vpack.c.b16 %v1078, %v1076
    %v1587 = vpack.c.b16 %v1081, %v1079
    %v1588 = vpack.c.b16 %v1082, %v1080
    %v1589 = vpack.c.b16 %v1085, %v1083
    %v1590 = vpack.c.b16 %v1086, %v1084
    %v1591 = vpack.c.b16 %v1089, %v1087
    %v1592 = vpack.c.b16 %v1090, %v1088
    %v1593 = vpack.c.b16 %v1093, %v1091
    %v1594 = vpack.c.b16 %v1094, %v1092
    %v1595 = vpack.c.b16 %v1097, %v1095
    %v1596 = vpack.c.b16 %v1098, %v1096
    %v1597 = vpack.c.b16 %v1101, %v1099
    %v1598 = vpack.c.b16 %v1102, %v1100
    %v1599 = vpack.c.b16 %v1105, %v1103
    %v1600 = vpack.c.b16 %v1106, %v1104
    %v1601 = vpack.c.b16 %v1109, %v1107
    %v1602 = vpack.c.b16 %v1110, %v1108
    %v1603 = vpack.c.b16 %v1113, %v1111
    %v1604 = vpack.c.b16 %v1114, %v1112
    %v1605 = vpack.c.b16 %v1117, %v1115
    %v1606 = vpack.c.b16 %v1118, %v1116
    %v1607 = vpack.c.b16 %v1121, %v1119
    %v1608 = vpack.c.b16 %v1122, %v1120
    %v1609 = vpack.c.b16 %v1125, %v1123
    %v1610 = vpack.c.b16 %v1126, %v1124
    %v1611 = vpack.c.b16 %v1129, %v1127
    %v1612 = vpack.c.b16 %v1130, %v1128
    %v1613 = vpack.c.b16 %v1133, %v1131
    %v1614 = vpack.c.b16 %v1134, %v1132
    %v1615 = vpack.c.b16 %v1137, %v1135
    %v1616 = vpack.c.b16 %v1138, %v1136
    %v1617 = vpack.c.b16 %v1141, %v1139
    %v1618 = vpack.c.b16 %v1142, %v1140
    %v1619 = vpack.c.b16 %v1145, %v1143
    %v1620 = vpack.c.b16 %v1146, %v1144
    %v1621 = vpack.c.b16 %v1149, %v1147
    %v1622 = vpack.c.b16 %v1150, %v1148
    %v1623 = vpack.c.b16 %v1153, %v1151
    %v1624 = vpack.c.b16 %v1154, %v1152
    %v1625 = vpack.c.b16 %v1157, %v1155
    %v1626 = vpack.c.b16 %v1158, %v1156
    %v1627 = vpack.c.b16 %v1161, %v1159
    %v1628 = vpack.c.b16 %v1162, %v1160
    %v1629 = vpack.c.b16 %v1165, %v1163
    %v1630 = vpack.c.b16 %v1166, %v1164
    %v1631 = vpack.c.b16 %v1169, %v1167
    %v1632 = vpack.c.b16 %v1170, %v1168
    %v1633 = vpack.c.b16 %v1173, %v1171
    %v1634 = vpack.c.b16 %v1174, %v1172
    %v1635 = vpack.c.b16 %v1177, %v1175
    %v1636 = vpack.c.b16 %v1178, %v1176
    %v1637 = vpack.c.b16 %v1181, %v1179
    %v1638 = vpack.c.b16 %v1182, %v1180
    %v1639 = vpack.c.b16 %v1185, %v1183
    %v1640 = vpack.c.b16 %v1186, %v1184
    %v1641 = vpack.c.b16 %v1189, %v1187
    %v1642 = vpack.c.b16 %v1190, %v1188
    %v1643 = vpack.c.b16 %v1193, %v1191
    %v1644 = vpack.c.b16 %v1194, %v1192
    %v1645 = vpack.c.b16 %v1197, %v1195
    %v1646 = vpack.c.b16 %v1198, %v1196
    %v1647 = vpack.c.b16 %v1201, %v1199
    %v1648 = vpack.c.b16 %v1202, %v1200
    %v1649 = vpack.c.b16 %v1205, %v1203
    %v1650 = vpack.c.b16 %v1206, %v1204
    %v1651 = vpack.c.b16 %v1209, %v1207
    %v1652 = vpack.c.b16 %v1210, %v1208
    %v1653 = vpack.c.b16 %v1213, %v1211
    %v1654 = vpack.c.b16 %v1214, %v1212
    %v1655 = vpack.c.b16 %v1217, %v1215
    %v1656 = vpack.c.b16 %v1218, %v1216
    %v1657 = vpack.c.b16 %v1221, %v1219
    %v1658 = vpack.c.b16 %v1222, %v1220
    %v1659 = vpack.c.b16 %v1225, %v1223
    %v1660 = vpack.c.b16 %v1226, %v1224
    %v1661 = vpack.c.b16 %v1229, %v1227
    %v1662 = vpack.c.b16 %v1230, %v1228
    %v1663 = vpack.c.b16 %v1233, %v1231
    %v1664 = vpack.c.b16 %v1234, %v1232
    %v1665 = vpack.c.b16 %v1237, %v1235
    %v1666 = vpack.c.b16 %v1238, %v1236
    %v1667 = vpack.c.b16 %v1241, %v1239
    %v1668 = vpack.c.b16 %v1242, %v1240
    %v1669 = vpack.c.b16 %v1245, %v1243
    %v1670 = vpack.c.b16 %v1246, %v1244
    %v1671 = vpack.c.b16 %v1249, %v1247
    %v1672 = vpack.c.b16 %v1250, %v1248
    %v1673 = vpack.c.b16 %v1253, %v1251
    %v1674 = vpack.c.b16 %v1254, %v1252
    %v1675 = vpack.c.b16 %v1257, %v1255
    %v1676 = vpack.c.b16 %v1258, %v1256
    %v1677 = vpack.c.b16 %v1261, %v1259
    %v1678 = vpack.c.b16 %v1262, %v1260
    %v1679 = vpack.c.b16 %v1265, %v1263
    %v1680 = vpack.c.b16 %v1266, %v1264
    %v1681 = vpack.c.b16 %v1269, %v1267
    %v1682 = vpack.c.b16 %v1270, %v1268
    %v1683 = vpack.c.b16 %v1273, %v1271
    %v1684 = vpack.c.b16 %v1274, %v1272
    %v1685 = vpack.c.b16 %v1277, %v1275
    %v1686 = vpack.c.b16 %v1278, %v1276
    %v1687 = vpack.c.b16 %v1281, %v1279
    %v1688 = vpack.c.b16 %v1282, %v1280
    %v1689 = vpack.c.b16 %v1285, %v1283
    %v1690 = vpack.c.b16 %v1286, %v1284
    %v1691 = vpack.c.b16 %v1289, %v1287
    %v1692 = vpack.c.b16 %v1290, %v1288
    %v1693 = vpack.c.b16 %v1293, %v1291
    %v1694 = vpack.c.b16 %v1294, %v1292
    %v1695 = vpack.c.b16 %v1297, %v1295
    %v1696 = vpack.c.b16 %v1298, %v1296
    %v1697 = vpack.c.b16 %v1301, %v1299
    %v1698 = vpack.c.b16 %v1302, %v1300
    %v1699 = vpack.c.b16 %v1305, %v1303
    %v1700 = vpack.c.b16 %v1306, %v1304
    %v1701 = vpack.c.b16 %v1309, %v1307
    %v1702 = vpack.c.b16 %v1310, %v1308
    %v1703 = vpack.c.b16 %v1313, %v1311
    %v1704 = vpack.c.b16 %v1314, %v1312
    %v1705 = vpack.c.b16 %v1317, %v1315
    %v1706 = vpack.c.b16 %v1318, %v1316
    %v1707 = vpack.c.b16 %v1321, %v1319
    %v1708 = vpack.c.b16 %v1322, %v1320
    %v1709 = vpack.c.b16 %v1325, %v1323
    %v1710 = vpack.c.b16 %v1326, %v1324
    %v1711 = vpack.c.b16 %v1329, %v1327
    %v1712 = vpack.c.b16 %v1330, %v1328
    %v1713 = vpack.c.b16 %v1333, %v1331
    %v1714 = vpack.c.b16 %v1334, %v1332
    %v1715 = vpack.c.b16 %v1337, %v1335
    %v1716 = vpack.c.b16 %v1338, %v1336
    %v1717 = vpack.c.b16 %v1341, %v1339
    %v1718 = vpack.c.b16 %v1342, %v1340
    %v1719 = vpack.c.b16 %v1345, %v1343
    %v1720 = vpack.c.b16 %v1346, %v1344
    %v1721 = vpack.c.b16 %v1349, %v1347
    %v1722 = vpack.c.b16 %v1350, %v1348
    %v1723 = vpack.c.b16 %v1353, %v1351
    %v1724 = vpack.c.b16 %v1354, %v1352
    %v1725 = vpack.c.b16 %v1357, %v1355
    %v1726 = vpack.c.b16 %v1358, %v1356
    %v1727 = vpack.c.b16 %v1361, %v1359
    %v1728 = vpack.c.b16 %v1362, %v1360
    %v1729 = vpack.c.b16 %v1365, %v1363
    %v1730 = vpack.c.b16 %v1366, %v1364
    %v1731 = vpack.c.b16 %v1369, %v1367
    %v1732 = vpack.c.b16 %v1370, %v1368
    %v1733 = vpack.c.b16 %v1373, %v1371
    %v1734 = vpack.c.b16 %v1374, %v1372
    %v1735 = vpack.c.b16 %v1377, %v1375
    %v1736 = vpack.c.b16 %v1378, %v1376
    %v1737 = vpack.c.b16 %v1381, %v1379
    %v1738 = vpack.c.b16 %v1382, %v1380
    %v1739 = vpack.c.b16 %v1385, %v1383
    %v1740 = vpack.c.b16 %v1386, %v1384
    %v1741 = vpack.c.b16 %v1389, %v1387
    %v1742 = vpack.c.b16 %v1390, %v1388
    %v1743 = vpack.c.b16 %v1393, %v1391
    %v1744 = vpack.c.b16 %v1394, %v1392
    %v1745 = vpack.c.b16 %v1397, %v1395
    %v1746 = vpack.c.b16 %v1398, %v1396
    %v1747 = vpack.c.b16 %v1401, %v1399
    %v1748 = vpack.c.b16 %v1402, %v1400
    %v1749 = vpack.c.b16 %v1405, %v1403
    %v1750 = vpack.c.b16 %v1406, %v1404
    %v1751 = vpack.c.b16 %v1409, %v1407
    %v1752 = vpack.c.b16 %v1410, %v1408
    %v1753 = vpack.c.b16 %v1413, %v1411
    %v1754 = vpack.c.b16 %v1414, %v1412
    %v1755 = vpack.c.b16 %v1417, %v1415
    %v1756 = vpack.c.b16 %v1418, %v1416
    %v1757 = vpack.c.b16 %v1421, %v1419
    %v1758 = vpack.c.b16 %v1422, %v1420
    %v1759 = vpack.c.b16 %v1425, %v1423
    %v1760 = vpack.c.b16 %v1426, %v1424
    %v1761 = vpack.c.b16 %v1429, %v1427
    %v1762 = vpack.c.b16 %v1430, %v1428
    %v1763 = vpack.c.b16 %v1433, %v1431
    %v1764 = vpack.c.b16 %v1434, %v1432
    %v1765 = vpack.c.b16 %v1437, %v1435
    %v1766 = vpack.c.b16 %v1438, %v1436
    %v1767 = vpack.c.b16 %v1441, %v1439
    %v1768 = vpack.c.b16 %v1442, %v1440
    %v1769 = vpack.c.b16 %v1445, %v1443
    %v1770 = vpack.c.b16 %v1446, %v1444
    %v1771 = vpack.c.b16 %v1449, %v1447
    %v1772 = vpack.c.b16 %v1450, %v1448
    %v1773 = vpack.c.b16 %v1453, %v1451
    %v1774 = vpack.c.b16 %v1454, %v1452
    %v1775 = vpack.c.b16 %v1457, %v1455
    %v1776 = vpack.c.b16 %v1458, %v1456
    %v1777 = vpack.c.b16 %v1461, %v1459
    %v1778 = vpack.c.b16 %v1462, %v1460
    %v1779 = vpack.c.b16 %v1465, %v1463
    %v1780 = vpack.c.b16 %v1466, %v1464
    %v1781 = vpack.c.b16 %v1469, %v1467
    %v1782 = vpack.c.b16 %v1470, %v1468
    %v1783 = vpack.c.b16 %v1473, %v1471
    %v1784 = vpack.c.b16 %v1474, %v1472
    %v1785 = vpack.c.b16 %v1477, %v1475
    %v1786 = vpack.c.b16 %v1478, %v1476
    %v1787 = vpack.c.b16 %v1481, %v1479
    %v1788 = vpack.c.b16 %v1482, %v1480
    %v1789 = vpack.c.b16 %v1485, %v1483
    %v1790 = vpack.c.b16 %v1486, %v1484
    %v1791 = vpack.c.b16 %v1489, %v1487
    %v1792 = vpack.c.b16 %v1490, %v1488
    %v1793 = vpack.c.b16 %v1493, %v1491
    %v1794 = vpack.c.b16 %v1494, %v1492
    %v1795 = vpack.c.b16 %v1497, %v1495
    %v1796 = vpack.c.b16 %v1498, %v1496
    %v1797 = vpack.c.b16 %v1501, %v1499
    %v1798 = vpack.c.b16 %v1502, %v1500
    %v1799 = vpack.c.b16 %v1505, %v1503
    %v1800 = vpack.c.b16 %v1506, %v1504
    %v1801 = vpack.c.b16 %v1509, %v1507
    %v1802 = vpack.c.b16 %v1510, %v1508
    %v1803 = vpack.c.b16 %v1513, %v1511
    %v1804 = vpack.c.b16 %v1514, %v1512
    %v1805 = vpack.c.b16 %v1517, %v1515
    %v1806 = vpack.c.b16 %v1518, %v1516
    %2095 = vmatprep.subr.bf16.mxu0 %v1520
    %2096 = vmatpush1.bf16.msra.mxu0 %v1519
    %2097 = vmatprep.subr.bf16.mxu0 %v1522
    %2098 = vmatpush1.bf16.msra.mxu0 %v1521
    %2099 = vmatprep.subr.bf16.mxu0 %v1524
    %2100 = vmatpush1.bf16.msra.mxu0 %v1523
    %2101 = vmatprep.subr.bf16.mxu0 %v1526
    %2102 = vmatpush1.bf16.msra.mxu0 %v1525
    %2103 = vmatprep.subr.bf16.mxu0 %v1528
    %2104 = vmatpush1.bf16.msra.mxu0 %v1527
    %2105 = vmatprep.subr.bf16.mxu0 %v1530
    %2106 = vmatpush1.bf16.msra.mxu0 %v1529
    %2107 = vmatprep.subr.bf16.mxu0 %v1532
    %2108 = vmatpush1.bf16.msra.mxu0 %v1531
    %2109 = vmatprep.subr.bf16.mxu0 %v1534
    %2110 = vmatpush1.bf16.msra.mxu0 %v1533
    %2111 = vmatprep.subr.bf16.mxu0 %v1536
    %2112 = vmatpush1.bf16.msra.mxu0 %v1535
    %2113 = vmatprep.subr.bf16.mxu0 %v1538
    %2114 = vmatpush1.bf16.msra.mxu0 %v1537
    %2115 = vmatprep.subr.bf16.mxu0 %v1540
    %2116 = vmatpush1.bf16.msra.mxu0 %v1539
    %2117 = vmatprep.subr.bf16.mxu0 %v1542
    %2118 = vmatpush1.bf16.msra.mxu0 %v1541
    %2119 = vmatprep.subr.bf16.mxu0 %v1544
    %2120 = vmatpush1.bf16.msra.mxu0 %v1543
    %2121 = vmatprep.subr.bf16.mxu0 %v1546
    %2122 = vmatpush1.bf16.msra.mxu0 %v1545
    %2123 = vmatprep.subr.bf16.mxu0 %v1548
    %2124 = vmatpush1.bf16.msra.mxu0 %v1547
    %2125 = vmatprep.subr.bf16.mxu0 %v1550
    %2126 = vmatpush1.bf16.msra.mxu0 %v1549
    %2127 = vmatprep.mubr.bf16.mxu0 %v620
    %2128 = vmatmul.mubr.bf16.gmra.mrb[0].mxu0 %v619
    %v2129 = vpop.f32.mrb[0].mxu0
    %v2130 = vadd.f32 %v585, %v2129
    %v2131 = vpop.f32.mrb[0].mxu0
    %v2132 = vadd.f32 %v589, %v2131
    %v2133 = vpop.f32.mrb[0].mxu0
    %v2134 = vpop.f32.mrb[0].mxu0
    %2135 = vdwg.mxu0
    %2136 = vmatprep.subr.bf16.mxu0 %v1552
    %2137 = vmatpush1.bf16.msra.mxu0 %v1551
    %2138 = vmatprep.subr.bf16.mxu0 %v1554
    %2139 = vmatpush1.bf16.msra.mxu0 %v1553
    %2140 = vmatprep.subr.bf16.mxu0 %v1556
    %2141 = vmatpush1.bf16.msra.mxu0 %v1555
    %2142 = vmatprep.subr.bf16.mxu0 %v1558
    %2143 = vmatpush1.bf16.msra.mxu0 %v1557
    %2144 = vmatprep.subr.bf16.mxu0 %v1560
    %2145 = vmatpush1.bf16.msra.mxu0 %v1559
    %2146 = vmatprep.subr.bf16.mxu0 %v1562
    %2147 = vmatpush1.bf16.msra.mxu0 %v1561
    %2148 = vmatprep.subr.bf16.mxu0 %v1564
    %2149 = vmatpush1.bf16.msra.mxu0 %v1563
    %2150 = vmatprep.subr.bf16.mxu0 %v1566
    %2151 = vmatpush1.bf16.msra.mxu0 %v1565
    %2152 = vmatprep.subr.bf16.mxu0 %v1568
    %2153 = vmatpush1.bf16.msra.mxu0 %v1567
    %2154 = vmatprep.subr.bf16.mxu0 %v1570
    %2155 = vmatpush1.bf16.msra.mxu0 %v1569
    %2156 = vmatprep.subr.bf16.mxu0 %v1572
    %2157 = vmatpush1.bf16.msra.mxu0 %v1571
    %2158 = vmatprep.subr.bf16.mxu0 %v1574
    %2159 = vmatpush1.bf16.msra.mxu0 %v1573
    %2160 = vmatprep.subr.bf16.mxu0 %v1576
    %2161 = vmatpush1.bf16.msra.mxu0 %v1575
    %2162 = vmatprep.subr.bf16.mxu0 %v1578
    %2163 = vmatpush1.bf16.msra.mxu0 %v1577
    %2164 = vmatprep.subr.bf16.mxu0 %v1580
    %2165 = vmatpush1.bf16.msra.mxu0 %v1579
    %2166 = vmatprep.subr.bf16.mxu0 %v1582
    %2167 = vmatpush1.bf16.msra.mxu0 %v1581
    %2168 = vmatprep.mubr.bf16.mxu0 %v622
    %2169 = vmatmul.mubr.bf16.gmra.mrb[0].mxu0 %v621
    %v2170 = vpop.f32.mrb[0].mxu0
    %v2171 = vadd.f32 %v2130, %v2170
    %v2172 = vpop.f32.mrb[0].mxu0
    %v2173 = vadd.f32 %v2132, %v2172
    %v2174 = vpop.f32.mrb[0].mxu0
    %v2175 = vpop.f32.mrb[0].mxu0
    %2176 = vdwg.mxu0
    %2177 = vmatprep.subr.bf16.mxu0 %v1584
    %2178 = vmatpush1.bf16.msra.mxu0 %v1583
    %2179 = vmatprep.subr.bf16.mxu0 %v1586
    %2180 = vmatpush1.bf16.msra.mxu0 %v1585
    %2181 = vmatprep.subr.bf16.mxu0 %v1588
    %2182 = vmatpush1.bf16.msra.mxu0 %v1587
    %2183 = vmatprep.subr.bf16.mxu0 %v1590
    %2184 = vmatpush1.bf16.msra.mxu0 %v1589
    %2185 = vmatprep.subr.bf16.mxu0 %v1592
    %2186 = vmatpush1.bf16.msra.mxu0 %v1591
    %2187 = vmatprep.subr.bf16.mxu0 %v1594
    %2188 = vmatpush1.bf16.msra.mxu0 %v1593
    %2189 = vmatprep.subr.bf16.mxu0 %v1596
    %2190 = vmatpush1.bf16.msra.mxu0 %v1595
    %2191 = vmatprep.subr.bf16.mxu0 %v1598
    %2192 = vmatpush1.bf16.msra.mxu0 %v1597
    %2193 = vmatprep.subr.bf16.mxu0 %v1600
    %2194 = vmatpush1.bf16.msra.mxu0 %v1599
    %2195 = vmatprep.subr.bf16.mxu0 %v1602
    %2196 = vmatpush1.bf16.msra.mxu0 %v1601
    %2197 = vmatprep.subr.bf16.mxu0 %v1604
    %2198 = vmatpush1.bf16.msra.mxu0 %v1603
    %2199 = vmatprep.subr.bf16.mxu0 %v1606
    %2200 = vmatpush1.bf16.msra.mxu0 %v1605
    %2201 = vmatprep.subr.bf16.mxu0 %v1608
    %2202 = vmatpush1.bf16.msra.mxu0 %v1607
    %2203 = vmatprep.subr.bf16.mxu0 %v1610
    %2204 = vmatpush1.bf16.msra.mxu0 %v1609
    %2205 = vmatprep.subr.bf16.mxu0 %v1612
    %2206 = vmatpush1.bf16.msra.mxu0 %v1611
    %2207 = vmatprep.subr.bf16.mxu0 %v1614
    %2208 = vmatpush1.bf16.msra.mxu0 %v1613
    %2209 = vmatprep.mubr.bf16.mxu0 %v624
    %2210 = vmatmul.mubr.bf16.gmra.mrb[0].mxu0 %v623
    %v2211 = vpop.f32.mrb[0].mxu0
    %v2212 = vadd.f32 %v2171, %v2211
    %v2213 = vpop.f32.mrb[0].mxu0
    %v2214 = vadd.f32 %v2173, %v2213
    %v2215 = vpop.f32.mrb[0].mxu0
    %v2216 = vpop.f32.mrb[0].mxu0
    %2217 = vdwg.mxu0
    %2218 = vmatprep.subr.bf16.mxu0 %v1616
    %2219 = vmatpush1.bf16.msra.mxu0 %v1615
    %2220 = vmatprep.subr.bf16.mxu0 %v1618
    %2221 = vmatpush1.bf16.msra.mxu0 %v1617
    %2222 = vmatprep.subr.bf16.mxu0 %v1620
    %2223 = vmatpush1.bf16.msra.mxu0 %v1619
    %2224 = vmatprep.subr.bf16.mxu0 %v1622
    %2225 = vmatpush1.bf16.msra.mxu0 %v1621
    %2226 = vmatprep.subr.bf16.mxu0 %v1624
    %2227 = vmatpush1.bf16.msra.mxu0 %v1623
    %2228 = vmatprep.subr.bf16.mxu0 %v1626
    %2229 = vmatpush1.bf16.msra.mxu0 %v1625
    %2230 = vmatprep.subr.bf16.mxu0 %v1628
    %2231 = vmatpush1.bf16.msra.mxu0 %v1627
    %2232 = vmatprep.subr.bf16.mxu0 %v1630
    %2233 = vmatpush1.bf16.msra.mxu0 %v1629
    %2234 = vmatprep.subr.bf16.mxu0 %v1632
    %2235 = vmatpush1.bf16.msra.mxu0 %v1631
    %2236 = vmatprep.subr.bf16.mxu0 %v1634
    %2237 = vmatpush1.bf16.msra.mxu0 %v1633
    %2238 = vmatprep.subr.bf16.mxu0 %v1636
    %2239 = vmatpush1.bf16.msra.mxu0 %v1635
    %2240 = vmatprep.subr.bf16.mxu0 %v1638
    %2241 = vmatpush1.bf16.msra.mxu0 %v1637
    %2242 = vmatprep.subr.bf16.mxu0 %v1640
    %2243 = vmatpush1.bf16.msra.mxu0 %v1639
    %2244 = vmatprep.subr.bf16.mxu0 %v1642
    %2245 = vmatpush1.bf16.msra.mxu0 %v1641
    %2246 = vmatprep.subr.bf16.mxu0 %v1644
    %2247 = vmatpush1.bf16.msra.mxu0 %v1643
    %2248 = vmatprep.subr.bf16.mxu0 %v1646
    %2249 = vmatpush1.bf16.msra.mxu0 %v1645
    %2250 = vmatprep.mubr.bf16.mxu0 %v626
    %2251 = vmatmul.mubr.bf16.gmra.mrb[0].mxu0 %v625
    %v2252 = vpop.f32.mrb[0].mxu0
    %v2253 = vadd.f32 %v2212, %v2252
    %v2254 = vpop.f32.mrb[0].mxu0
    %v2255 = vadd.f32 %v2214, %v2254
    %v2256 = vpop.f32.mrb[0].mxu0
    %v2257 = vpop.f32.mrb[0].mxu0
    %2258 = vdwg.mxu0
    %2259 = vmatprep.subr.bf16.mxu0 %v1648
    %2260 = vmatpush1.bf16.msra.mxu0 %v1647
    %2261 = vmatprep.subr.bf16.mxu0 %v1650
    %2262 = vmatpush1.bf16.msra.mxu0 %v1649
    %2263 = vmatprep.subr.bf16.mxu0 %v1652
    %2264 = vmatpush1.bf16.msra.mxu0 %v1651
    %2265 = vmatprep.subr.bf16.mxu0 %v1654
    %2266 = vmatpush1.bf16.msra.mxu0 %v1653
    %2267 = vmatprep.subr.bf16.mxu0 %v1656
    %2268 = vmatpush1.bf16.msra.mxu0 %v1655
    %2269 = vmatprep.subr.bf16.mxu0 %v1658
    %2270 = vmatpush1.bf16.msra.mxu0 %v1657
    %2271 = vmatprep.subr.bf16.mxu0 %v1660
    %2272 = vmatpush1.bf16.msra.mxu0 %v1659
    %2273 = vmatprep.subr.bf16.mxu0 %v1662
    %2274 = vmatpush1.bf16.msra.mxu0 %v1661
    %2275 = vmatprep.subr.bf16.mxu0 %v1664
    %2276 = vmatpush1.bf16.msra.mxu0 %v1663
    %2277 = vmatprep.subr.bf16.mxu0 %v1666
    %2278 = vmatpush1.bf16.msra.mxu0 %v1665
    %2279 = vmatprep.subr.bf16.mxu0 %v1668
    %2280 = vmatpush1.bf16.msra.mxu0 %v1667
    %2281 = vmatprep.subr.bf16.mxu0 %v1670
    %2282 = vmatpush1.bf16.msra.mxu0 %v1669
    %2283 = vmatprep.subr.bf16.mxu0 %v1672
    %2284 = vmatpush1.bf16.msra.mxu0 %v1671
    %2285 = vmatprep.subr.bf16.mxu0 %v1674
    %2286 = vmatpush1.bf16.msra.mxu0 %v1673
    %2287 = vmatprep.subr.bf16.mxu0 %v1676
    %2288 = vmatpush1.bf16.msra.mxu0 %v1675
    %2289 = vmatprep.subr.bf16.mxu0 %v1678
    %2290 = vmatpush1.bf16.msra.mxu0 %v1677
    %2291 = vmatprep.mubr.bf16.mxu0 %v628
    %2292 = vmatmul.mubr.bf16.gmra.mrb[0].mxu0 %v627
    %v2293 = vpop.f32.mrb[0].mxu0
    %v2294 = vadd.f32 %v2253, %v2293
    %v2295 = vpop.f32.mrb[0].mxu0
    %v2296 = vadd.f32 %v2255, %v2295
    %v2297 = vpop.f32.mrb[0].mxu0
    %v2298 = vpop.f32.mrb[0].mxu0
    %2299 = vdwg.mxu0
    %2300 = vmatprep.subr.bf16.mxu0 %v1680
    %2301 = vmatpush1.bf16.msra.mxu0 %v1679
    %2302 = vmatprep.subr.bf16.mxu0 %v1682
    %2303 = vmatpush1.bf16.msra.mxu0 %v1681
    %2304 = vmatprep.subr.bf16.mxu0 %v1684
    %2305 = vmatpush1.bf16.msra.mxu0 %v1683
    %2306 = vmatprep.subr.bf16.mxu0 %v1686
    %2307 = vmatpush1.bf16.msra.mxu0 %v1685
    %2308 = vmatprep.subr.bf16.mxu0 %v1688
    %2309 = vmatpush1.bf16.msra.mxu0 %v1687
    %2310 = vmatprep.subr.bf16.mxu0 %v1690
    %2311 = vmatpush1.bf16.msra.mxu0 %v1689
    %2312 = vmatprep.subr.bf16.mxu0 %v1692
    %2313 = vmatpush1.bf16.msra.mxu0 %v1691
    %2314 = vmatprep.subr.bf16.mxu0 %v1694
    %2315 = vmatpush1.bf16.msra.mxu0 %v1693
    %2316 = vmatprep.subr.bf16.mxu0 %v1696
    %2317 = vmatpush1.bf16.msra.mxu0 %v1695
    %2318 = vmatprep.subr.bf16.mxu0 %v1698
    %2319 = vmatpush1.bf16.msra.mxu0 %v1697
    %2320 = vmatprep.subr.bf16.mxu0 %v1700
    %2321 = vmatpush1.bf16.msra.mxu0 %v1699
    %2322 = vmatprep.subr.bf16.mxu0 %v1702
    %2323 = vmatpush1.bf16.msra.mxu0 %v1701
    %2324 = vmatprep.subr.bf16.mxu0 %v1704
    %2325 = vmatpush1.bf16.msra.mxu0 %v1703
    %2326 = vmatprep.subr.bf16.mxu0 %v1706
    %2327 = vmatpush1.bf16.msra.mxu0 %v1705
    %2328 = vmatprep.subr.bf16.mxu0 %v1708
    %2329 = vmatpush1.bf16.msra.mxu0 %v1707
    %2330 = vmatprep.subr.bf16.mxu0 %v1710
    %2331 = vmatpush1.bf16.msra.mxu0 %v1709
    %2332 = vmatprep.mubr.bf16.mxu0 %v630
    %2333 = vmatmul.mubr.bf16.gmra.mrb[0].mxu0 %v629
    %v2334 = vpop.f32.mrb[0].mxu0
    %v2335 = vadd.f32 %v2294, %v2334
    %v2336 = vpop.f32.mrb[0].mxu0
    %v2337 = vadd.f32 %v2296, %v2336
    %v2338 = vpop.f32.mrb[0].mxu0
    %v2339 = vpop.f32.mrb[0].mxu0
    %2340 = vdwg.mxu0
    %2341 = vmatprep.subr.bf16.mxu0 %v1712
    %2342 = vmatpush1.bf16.msra.mxu0 %v1711
    %2343 = vmatprep.subr.bf16.mxu0 %v1714
    %2344 = vmatpush1.bf16.msra.mxu0 %v1713
    %2345 = vmatprep.subr.bf16.mxu0 %v1716
    %2346 = vmatpush1.bf16.msra.mxu0 %v1715
    %2347 = vmatprep.subr.bf16.mxu0 %v1718
    %2348 = vmatpush1.bf16.msra.mxu0 %v1717
    %2349 = vmatprep.subr.bf16.mxu0 %v1720
    %2350 = vmatpush1.bf16.msra.mxu0 %v1719
    %2351 = vmatprep.subr.bf16.mxu0 %v1722
    %2352 = vmatpush1.bf16.msra.mxu0 %v1721
    %2353 = vmatprep.subr.bf16.mxu0 %v1724
    %2354 = vmatpush1.bf16.msra.mxu0 %v1723
    %2355 = vmatprep.subr.bf16.mxu0 %v1726
    %2356 = vmatpush1.bf16.msra.mxu0 %v1725
    %2357 = vmatprep.subr.bf16.mxu0 %v1728
    %2358 = vmatpush1.bf16.msra.mxu0 %v1727
    %2359 = vmatprep.subr.bf16.mxu0 %v1730
    %2360 = vmatpush1.bf16.msra.mxu0 %v1729
    %2361 = vmatprep.subr.bf16.mxu0 %v1732
    %2362 = vmatpush1.bf16.msra.mxu0 %v1731
    %2363 = vmatprep.subr.bf16.mxu0 %v1734
    %2364 = vmatpush1.bf16.msra.mxu0 %v1733
    %2365 = vmatprep.subr.bf16.mxu0 %v1736
    %2366 = vmatpush1.bf16.msra.mxu0 %v1735
    %2367 = vmatprep.subr.bf16.mxu0 %v1738
    %2368 = vmatpush1.bf16.msra.mxu0 %v1737
    %2369 = vmatprep.subr.bf16.mxu0 %v1740
    %2370 = vmatpush1.bf16.msra.mxu0 %v1739
    %2371 = vmatprep.subr.bf16.mxu0 %v1742
    %2372 = vmatpush1.bf16.msra.mxu0 %v1741
    %2373 = vmatprep.mubr.bf16.mxu0 %v632
    %2374 = vmatmul.mubr.bf16.gmra.mrb[0].mxu0 %v631
    %v2375 = vpop.f32.mrb[0].mxu0
    %v2376 = vadd.f32 %v2335, %v2375
    %v2377 = vpop.f32.mrb[0].mxu0
    %v2378 = vadd.f32 %v2337, %v2377
    %v2379 = vpop.f32.mrb[0].mxu0
    %v2380 = vpop.f32.mrb[0].mxu0
    %2381 = vdwg.mxu0
    %2382 = vmatprep.subr.bf16.mxu0 %v1744
    %2383 = vmatpush1.bf16.msra.mxu0 %v1743
    %2384 = vmatprep.subr.bf16.mxu0 %v1746
    %2385 = vmatpush1.bf16.msra.mxu0 %v1745
    %2386 = vmatprep.subr.bf16.mxu0 %v1748
    %2387 = vmatpush1.bf16.msra.mxu0 %v1747
    %2388 = vmatprep.subr.bf16.mxu0 %v1750
    %2389 = vmatpush1.bf16.msra.mxu0 %v1749
    %2390 = vmatprep.subr.bf16.mxu0 %v1752
    %2391 = vmatpush1.bf16.msra.mxu0 %v1751
    %2392 = vmatprep.subr.bf16.mxu0 %v1754
    %2393 = vmatpush1.bf16.msra.mxu0 %v1753
    %2394 = vmatprep.subr.bf16.mxu0 %v1756
    %2395 = vmatpush1.bf16.msra.mxu0 %v1755
    %2396 = vmatprep.subr.bf16.mxu0 %v1758
    %2397 = vmatpush1.bf16.msra.mxu0 %v1757
    %2398 = vmatprep.subr.bf16.mxu0 %v1760
    %2399 = vmatpush1.bf16.msra.mxu0 %v1759
    %2400 = vmatprep.subr.bf16.mxu0 %v1762
    %2401 = vmatpush1.bf16.msra.mxu0 %v1761
    %2402 = vmatprep.subr.bf16.mxu0 %v1764
    %2403 = vmatpush1.bf16.msra.mxu0 %v1763
    %2404 = vmatprep.subr.bf16.mxu0 %v1766
    %2405 = vmatpush1.bf16.msra.mxu0 %v1765
    %2406 = vmatprep.subr.bf16.mxu0 %v1768
    %2407 = vmatpush1.bf16.msra.mxu0 %v1767
    %2408 = vmatprep.subr.bf16.mxu0 %v1770
    %2409 = vmatpush1.bf16.msra.mxu0 %v1769
    %2410 = vmatprep.subr.bf16.mxu0 %v1772
    %2411 = vmatpush1.bf16.msra.mxu0 %v1771
    %2412 = vmatprep.subr.bf16.mxu0 %v1774
    %2413 = vmatpush1.bf16.msra.mxu0 %v1773
    %2414 = vmatprep.mubr.bf16.mxu0 %v634
    %2415 = vmatmul.mubr.bf16.gmra.mrb[0].mxu0 %v633
    %v2416 = vpop.f32.mrb[0].mxu0
    %v2417 = vadd.f32 %v2376, %v2416
    %v2418 = vpop.f32.mrb[0].mxu0
    %v2419 = vadd.f32 %v2378, %v2418
    %v2420 = vpop.f32.mrb[0].mxu0
    %v2421 = vpop.f32.mrb[0].mxu0
    %2422 = vdwg.mxu0
    %2423 = vmatprep.subr.bf16.mxu0 %v1776
    %2424 = vmatpush1.bf16.msra.mxu0 %v1775
    %2425 = vmatprep.subr.bf16.mxu0 %v1778
    %2426 = vmatpush1.bf16.msra.mxu0 %v1777
    %2427 = vmatprep.subr.bf16.mxu0 %v1780
    %2428 = vmatpush1.bf16.msra.mxu0 %v1779
    %2429 = vmatprep.subr.bf16.mxu0 %v1782
    %2430 = vmatpush1.bf16.msra.mxu0 %v1781
    %2431 = vmatprep.subr.bf16.mxu0 %v1784
    %2432 = vmatpush1.bf16.msra.mxu0 %v1783
    %2433 = vmatprep.subr.bf16.mxu0 %v1786
    %2434 = vmatpush1.bf16.msra.mxu0 %v1785
    %2435 = vmatprep.subr.bf16.mxu0 %v1788
    %2436 = vmatpush1.bf16.msra.mxu0 %v1787
    %2437 = vmatprep.subr.bf16.mxu0 %v1790
    %2438 = vmatpush1.bf16.msra.mxu0 %v1789
    %2439 = vmatprep.subr.bf16.mxu0 %v1792
    %2440 = vmatpush1.bf16.msra.mxu0 %v1791
    %2441 = vmatprep.subr.bf16.mxu0 %v1794
    %2442 = vmatpush1.bf16.msra.mxu0 %v1793
    %2443 = vmatprep.subr.bf16.mxu0 %v1796
    %2444 = vmatpush1.bf16.msra.mxu0 %v1795
    %2445 = vmatprep.subr.bf16.mxu0 %v1798
    %2446 = vmatpush1.bf16.msra.mxu0 %v1797
    %2447 = vmatprep.subr.bf16.mxu0 %v1800
    %2448 = vmatpush1.bf16.msra.mxu0 %v1799
    %2449 = vmatprep.subr.bf16.mxu0 %v1802
    %2450 = vmatpush1.bf16.msra.mxu0 %v1801
    %2451 = vmatprep.subr.bf16.mxu0 %v1804
    %2452 = vmatpush1.bf16.msra.mxu0 %v1803
    %2453 = vmatprep.subr.bf16.mxu0 %v1806
    %2454 = vmatpush1.bf16.msra.mxu0 %v1805
    %2455 = vmatprep.mubr.bf16.mxu0 %v636
    %2456 = vmatmul.mubr.bf16.gmra.mrb[0].mxu0 %v635
    %v2457 = vpop.f32.mrb[0].mxu0
    %v2458 = vadd.f32 %v2417, %v2457
    %v2459 = vpop.f32.mrb[0].mxu0
    %v2460 = vadd.f32 %v2419, %v2459
    %v2461 = vpop.f32.mrb[0].mxu0
    %v2462 = vpop.f32.mrb[0].mxu0
    %2463 = vdwg.mxu0
    %v2464 = vmax.f32 %v2458, 0.0
    %v2465 = vmax.f32 %v2460, 0.0
    %v2466 = vpack.c.bf16 %v2464, %v2464
    %v2467 = vpack.c.bf16 %v2465, %v2465
    %v2468 = vld [vmem:[#allocation14] sm:$0xff]
    %v2469 = vld [vmem:[#allocation14 + $0x8] sm:$0xff]
    %v2470 = vld [vmem:[#allocation14 + $0x10] sm:$0xff]
    %v2471 = vld [vmem:[#allocation14 + $0x18] sm:$0xff]
    %v2472 = vld [vmem:[#allocation14 + $0x20] sm:$0xff]
    %v2473 = vld [vmem:[#allocation14 + $0x28] sm:$0xff]
    %v2474 = vld [vmem:[#allocation14 + $0x30] sm:$0xff]
    %v2475 = vld [vmem:[#allocation14 + $0x38] sm:$0xff]
    %v2476 = vld [vmem:[#allocation14 + $0x40] sm:$0xff]
    %v2477 = vld [vmem:[#allocation14 + $0x48] sm:$0xff]
    %v2478 = vld [vmem:[#allocation14 + $0x50] sm:$0xff]
    %v2479 = vld [vmem:[#allocation14 + $0x58] sm:$0xff]
    %v2480 = vld [vmem:[#allocation14 + $0x60] sm:$0xff]
    %v2481 = vld [vmem:[#allocation14 + $0x68] sm:$0xff]
    %v2482 = vld [vmem:[#allocation14 + $0x70] sm:$0xff]
    %v2483 = vld [vmem:[#allocation14 + $0x78] sm:$0xff]
    %v2484 = vld [vmem:[#allocation14 + $0x80] sm:$0xff]
    %v2485 = vld [vmem:[#allocation14 + $0x88] sm:$0xff]
    %v2486 = vld [vmem:[#allocation14 + $0x90] sm:$0xff]
    %v2487 = vld [vmem:[#allocation14 + $0x98] sm:$0xff]
    %v2488 = vld [vmem:[#allocation14 + $0xa0] sm:$0xff]
    %v2489 = vld [vmem:[#allocation14 + $0xa8] sm:$0xff]
    %v2490 = vld [vmem:[#allocation14 + $0xb0] sm:$0xff]
    %v2491 = vld [vmem:[#allocation14 + $0xb8] sm:$0xff]
    %v2492 = vld [vmem:[#allocation14 + $0xc0] sm:$0xff]
    %v2493 = vld [vmem:[#allocation14 + $0xc8] sm:$0xff]
    %v2494 = vld [vmem:[#allocation14 + $0xd0] sm:$0xff]
    %v2495 = vld [vmem:[#allocation14 + $0xd8] sm:$0xff]
    %v2496 = vld [vmem:[#allocation14 + $0xe0] sm:$0xff]
    %v2497 = vld [vmem:[#allocation14 + $0xe8] sm:$0xff]
    %v2498 = vld [vmem:[#allocation14 + $0xf0] sm:$0xff]
    %v2499 = vld [vmem:[#allocation14 + $0xf8] sm:$0xff]
    %v2532 = vunpack.c.l.b16 %v2468
    %v2533 = vunpack.c.h.b16 %v2468
    %v2534 = vunpack.c.l.b16 %v2469
    %v2535 = vunpack.c.h.b16 %v2469
    %v2536 = vunpack.c.l.b16 %v2470
    %v2537 = vunpack.c.h.b16 %v2470
    %v2538 = vunpack.c.l.b16 %v2471
    %v2539 = vunpack.c.h.b16 %v2471
    %v2540 = vunpack.c.l.b16 %v2472
    %v2541 = vunpack.c.h.b16 %v2472
    %v2542 = vunpack.c.l.b16 %v2473
    %v2543 = vunpack.c.h.b16 %v2473
    %v2544 = vunpack.c.l.b16 %v2474
    %v2545 = vunpack.c.h.b16 %v2474
    %v2546 = vunpack.c.l.b16 %v2475
    %v2547 = vunpack.c.h.b16 %v2475
    %v2548 = vunpack.c.l.b16 %v2476
    %v2549 = vunpack.c.h.b16 %v2476
    %v2550 = vunpack.c.l.b16 %v2477
    %v2551 = vunpack.c.h.b16 %v2477
    %v2552 = vunpack.c.l.b16 %v2478
    %v2553 = vunpack.c.h.b16 %v2478
    %v2554 = vunpack.c.l.b16 %v2479
    %v2555 = vunpack.c.h.b16 %v2479
    %v2556 = vunpack.c.l.b16 %v2480
    %v2557 = vunpack.c.h.b16 %v2480
    %v2558 = vunpack.c.l.b16 %v2481
    %v2559 = vunpack.c.h.b16 %v2481
    %v2560 = vunpack.c.l.b16 %v2482
    %v2561 = vunpack.c.h.b16 %v2482
    %v2562 = vunpack.c.l.b16 %v2483
    %v2563 = vunpack.c.h.b16 %v2483
    %v2564 = vunpack.c.l.b16 %v2484
    %v2565 = vunpack.c.h.b16 %v2484
    %v2566 = vunpack.c.l.b16 %v2485
    %v2567 = vunpack.c.h.b16 %v2485
    %v2568 = vunpack.c.l.b16 %v2486
    %v2569 = vunpack.c.h.b16 %v2486
    %v2570 = vunpack.c.l.b16 %v2487
    %v2571 = vunpack.c.h.b16 %v2487
    %v2572 = vunpack.c.l.b16 %v2488
    %v2573 = vunpack.c.h.b16 %v2488
    %v2574 = vunpack.c.l.b16 %v2489
    %v2575 = vunpack.c.h.b16 %v2489
    %v2576 = vunpack.c.l.b16 %v2490
    %v2577 = vunpack.c.h.b16 %v2490
    %v2578 = vunpack.c.l.b16 %v2491
    %v2579 = vunpack.c.h.b16 %v2491
    %v2580 = vunpack.c.l.b16 %v2492
    %v2581 = vunpack.c.h.b16 %v2492
    %v2582 = vunpack.c.l.b16 %v2493
    %v2583 = vunpack.c.h.b16 %v2493
    %v2584 = vunpack.c.l.b16 %v2494
    %v2585 = vunpack.c.h.b16 %v2494
    %v2586 = vunpack.c.l.b16 %v2495
    %v2587 = vunpack.c.h.b16 %v2495
    %v2588 = vunpack.c.l.b16 %v2496
    %v2589 = vunpack.c.h.b16 %v2496
    %v2590 = vunpack.c.l.b16 %v2497
    %v2591 = vunpack.c.h.b16 %v2497
    %v2592 = vunpack.c.l.b16 %v2498
    %v2593 = vunpack.c.h.b16 %v2498
    %v2594 = vunpack.c.l.b16 %v2499
    %v2595 = vunpack.c.h.b16 %v2499
    %v2596 = vpack.c.b16 %v2534, %v2532
    %v2597 = vpack.c.b16 %v2535, %v2533
    %v2598 = vpack.c.b16 %v2538, %v2536
    %v2599 = vpack.c.b16 %v2539, %v2537
    %v2600 = vpack.c.b16 %v2542, %v2540
    %v2601 = vpack.c.b16 %v2543, %v2541
    %v2602 = vpack.c.b16 %v2546, %v2544
    %v2603 = vpack.c.b16 %v2547, %v2545
    %v2604 = vpack.c.b16 %v2550, %v2548
    %v2605 = vpack.c.b16 %v2551, %v2549
    %v2606 = vpack.c.b16 %v2554, %v2552
    %v2607 = vpack.c.b16 %v2555, %v2553
    %v2608 = vpack.c.b16 %v2558, %v2556
    %v2609 = vpack.c.b16 %v2559, %v2557
    %v2610 = vpack.c.b16 %v2562, %v2560
    %v2611 = vpack.c.b16 %v2563, %v2561
    %v2612 = vpack.c.b16 %v2566, %v2564
    %v2613 = vpack.c.b16 %v2567, %v2565
    %v2614 = vpack.c.b16 %v2570, %v2568
    %v2615 = vpack.c.b16 %v2571, %v2569
    %v2616 = vpack.c.b16 %v2574, %v2572
    %v2617 = vpack.c.b16 %v2575, %v2573
    %v2618 = vpack.c.b16 %v2578, %v2576
    %v2619 = vpack.c.b16 %v2579, %v2577
    %v2620 = vpack.c.b16 %v2582, %v2580
    %v2621 = vpack.c.b16 %v2583, %v2581
    %v2622 = vpack.c.b16 %v2586, %v2584
    %v2623 = vpack.c.b16 %v2587, %v2585
    %v2624 = vpack.c.b16 %v2590, %v2588
    %v2625 = vpack.c.b16 %v2591, %v2589
    %v2626 = vpack.c.b16 %v2594, %v2592
    %v2627 = vpack.c.b16 %v2595, %v2593
    %2660 = vmatprep.subr.bf16.mxu0 %v2597
    %2661 = vmatpush1.bf16.msra.mxu0 %v2596
    %2662 = vmatprep.subr.bf16.mxu0 %v2599
    %2663 = vmatpush1.bf16.msra.mxu0 %v2598
    %2664 = vmatprep.subr.bf16.mxu0 %v2601
    %2665 = vmatpush1.bf16.msra.mxu0 %v2600
    %2666 = vmatprep.subr.bf16.mxu0 %v2603
    %2667 = vmatpush1.bf16.msra.mxu0 %v2602
    %2668 = vmatprep.subr.bf16.mxu0 %v2605
    %2669 = vmatpush1.bf16.msra.mxu0 %v2604
    %2670 = vmatprep.subr.bf16.mxu0 %v2607
    %2671 = vmatpush1.bf16.msra.mxu0 %v2606
    %2672 = vmatprep.subr.bf16.mxu0 %v2609
    %2673 = vmatpush1.bf16.msra.mxu0 %v2608
    %2674 = vmatprep.subr.bf16.mxu0 %v2611
    %2675 = vmatpush1.bf16.msra.mxu0 %v2610
    %2676 = vmatprep.subr.bf16.mxu0 %v2613
    %2677 = vmatpush1.bf16.msra.mxu0 %v2612
    %2678 = vmatprep.subr.bf16.mxu0 %v2615
    %2679 = vmatpush1.bf16.msra.mxu0 %v2614
    %2680 = vmatprep.subr.bf16.mxu0 %v2617
    %2681 = vmatpush1.bf16.msra.mxu0 %v2616
    %2682 = vmatprep.subr.bf16.mxu0 %v2619
    %2683 = vmatpush1.bf16.msra.mxu0 %v2618
    %2684 = vmatprep.subr.bf16.mxu0 %v2621
    %2685 = vmatpush1.bf16.msra.mxu0 %v2620
    %2686 = vmatprep.subr.bf16.mxu0 %v2623
    %2687 = vmatpush1.bf16.msra.mxu0 %v2622
    %2688 = vmatprep.subr.bf16.mxu0 %v2625
    %2689 = vmatpush1.bf16.msra.mxu0 %v2624
    %2690 = vmatprep.subr.bf16.mxu0 %v2627
    %2691 = vmatpush1.bf16.msra.mxu0 %v2626
    %2692 = vmatprep.mubr.bf16.mxu0 %v2467
    %2693 = vmatmul.mubr.bf16.gmra.mrb[0].mxu0 %v2466
    %v2694 = vpop.f32.mrb[0].mxu0
    %v2695 = vadd.f32 0.0, %v2694
    %v2696 = vpop.f32.mrb[0].mxu0
    %v2697 = vadd.f32 0.0, %v2696
    %v2698 = vpop.f32.mrb[0].mxu0
    %v2699 = vpop.f32.mrb[0].mxu0
    %2700 = vdwg.mxu0
    %v2733 = vunpack.c.l.b16 %v251
    %v2734 = vunpack.c.h.b16 %v251
    %v2735 = vunpack.c.l.b16 %v252
    %v2736 = vunpack.c.h.b16 %v252
    %v2737 = vunpack.c.l.b16 %v253
    %v2738 = vunpack.c.h.b16 %v253
    %v2739 = vunpack.c.l.b16 %v254
    %v2740 = vunpack.c.h.b16 %v254
    %v2741 = vunpack.c.l.b16 %v255
    %v2742 = vunpack.c.h.b16 %v255
    %v2743 = vunpack.c.l.b16 %v256
    %v2744 = vunpack.c.h.b16 %v256
    %v2745 = vunpack.c.l.b16 %v257
    %v2746 = vunpack.c.h.b16 %v257
    %v2747 = vunpack.c.l.b16 %v258
    %v2748 = vunpack.c.h.b16 %v258
    %v2749 = vunpack.c.l.b16 %v259
    %v2750 = vunpack.c.h.b16 %v259
    %v2751 = vunpack.c.l.b16 %v260
    %v2752 = vunpack.c.h.b16 %v260
    %v2753 = vunpack.c.l.b16 %v261
    %v2754 = vunpack.c.h.b16 %v261
    %v2755 = vunpack.c.l.b16 %v262
    %v2756 = vunpack.c.h.b16 %v262
    %v2757 = vunpack.c.l.b16 %v263
    %v2758 = vunpack.c.h.b16 %v263
    %v2759 = vunpack.c.l.b16 %v264
    %v2760 = vunpack.c.h.b16 %v264
    %v2761 = vunpack.c.l.b16 %v265
    %v2762 = vunpack.c.h.b16 %v265
    %v2763 = vunpack.c.l.b16 %v266
    %v2764 = vunpack.c.h.b16 %v266
    %v2765 = vunpack.c.l.b16 %v267
    %v2766 = vunpack.c.h.b16 %v267
    %v2767 = vunpack.c.l.b16 %v268
    %v2768 = vunpack.c.h.b16 %v268
    %v2769 = vunpack.c.l.b16 %v269
    %v2770 = vunpack.c.h.b16 %v269
    %v2771 = vunpack.c.l.b16 %v270
    %v2772 = vunpack.c.h.b16 %v270
    %v2773 = vunpack.c.l.b16 %v271
    %v2774 = vunpack.c.h.b16 %v271
    %v2775 = vunpack.c.l.b16 %v272
    %v2776 = vunpack.c.h.b16 %v272
    %v2777 = vunpack.c.l.b16 %v273
    %v2778 = vunpack.c.h.b16 %v273
    %v2779 = vunpack.c.l.b16 %v274
    %v2780 = vunpack.c.h.b16 %v274
    %v2781 = vunpack.c.l.b16 %v275
    %v2782 = vunpack.c.h.b16 %v275
    %v2783 = vunpack.c.l.b16 %v276
    %v2784 = vunpack.c.h.b16 %v276
    %v2785 = vunpack.c.l.b16 %v277
    %v2786 = vunpack.c.h.b16 %v277
    %v2787 = vunpack.c.l.b16 %v278
    %v2788 = vunpack.c.h.b16 %v278
    %v2789 = vunpack.c.l.b16 %v279
    %v2790 = vunpack.c.h.b16 %v279
    %v2791 = vunpack.c.l.b16 %v280
    %v2792 = vunpack.c.h.b16 %v280
    %v2793 = vunpack.c.l.b16 %v281
    %v2794 = vunpack.c.h.b16 %v281
    %v2795 = vunpack.c.l.b16 %v282
    %v2796 = vunpack.c.h.b16 %v282
    %v2797 = vpack.c.b16 %v2735, %v2733
    %v2798 = vpack.c.b16 %v2736, %v2734
    %v2799 = vpack.c.b16 %v2739, %v2737
    %v2800 = vpack.c.b16 %v2740, %v2738
    %v2801 = vpack.c.b16 %v2743, %v2741
    %v2802 = vpack.c.b16 %v2744, %v2742
    %v2803 = vpack.c.b16 %v2747, %v2745
    %v2804 = vpack.c.b16 %v2748, %v2746
    %v2805 = vpack.c.b16 %v2751, %v2749
    %v2806 = vpack.c.b16 %v2752, %v2750
    %v2807 = vpack.c.b16 %v2755, %v2753
    %v2808 = vpack.c.b16 %v2756, %v2754
    %v2809 = vpack.c.b16 %v2759, %v2757
    %v2810 = vpack.c.b16 %v2760, %v2758
    %v2811 = vpack.c.b16 %v2763, %v2761
    %v2812 = vpack.c.b16 %v2764, %v2762
    %v2813 = vpack.c.b16 %v2767, %v2765
    %v2814 = vpack.c.b16 %v2768, %v2766
    %v2815 = vpack.c.b16 %v2771, %v2769
    %v2816 = vpack.c.b16 %v2772, %v2770
    %v2817 = vpack.c.b16 %v2775, %v2773
    %v2818 = vpack.c.b16 %v2776, %v2774
    %v2819 = vpack.c.b16 %v2779, %v2777
    %v2820 = vpack.c.b16 %v2780, %v2778
    %v2821 = vpack.c.b16 %v2783, %v2781
    %v2822 = vpack.c.b16 %v2784, %v2782
    %v2823 = vpack.c.b16 %v2787, %v2785
    %v2824 = vpack.c.b16 %v2788, %v2786
    %v2825 = vpack.c.b16 %v2791, %v2789
    %v2826 = vpack.c.b16 %v2792, %v2790
    %v2827 = vpack.c.b16 %v2795, %v2793
    %v2828 = vpack.c.b16 %v2796, %v2794
    %2861 = vmatprep.subr.bf16.mxu0 %v2798
    %2862 = vmatpush1.bf16.msra.mxu0 %v2797
    %2863 = vmatprep.subr.bf16.mxu0 %v2800
    %2864 = vmatpush1.bf16.msra.mxu0 %v2799
    %2865 = vmatprep.subr.bf16.mxu0 %v2802
    %2866 = vmatpush1.bf16.msra.mxu0 %v2801
    %2867 = vmatprep.subr.bf16.mxu0 %v2804
    %2868 = vmatpush1.bf16.msra.mxu0 %v2803
    %2869 = vmatprep.subr.bf16.mxu0 %v2806
    %2870 = vmatpush1.bf16.msra.mxu0 %v2805
    %2871 = vmatprep.subr.bf16.mxu0 %v2808
    %2872 = vmatpush1.bf16.msra.mxu0 %v2807
    %2873 = vmatprep.subr.bf16.mxu0 %v2810
    %2874 = vmatpush1.bf16.msra.mxu0 %v2809
    %2875 = vmatprep.subr.bf16.mxu0 %v2812
    %2876 = vmatpush1.bf16.msra.mxu0 %v2811
    %2877 = vmatprep.subr.bf16.mxu0 %v2814
    %2878 = vmatpush1.bf16.msra.mxu0 %v2813
    %2879 = vmatprep.subr.bf16.mxu0 %v2816
    %2880 = vmatpush1.bf16.msra.mxu0 %v2815
    %2881 = vmatprep.subr.bf16.mxu0 %v2818
    %2882 = vmatpush1.bf16.msra.mxu0 %v2817
    %2883 = vmatprep.subr.bf16.mxu0 %v2820
    %2884 = vmatpush1.bf16.msra.mxu0 %v2819
    %2885 = vmatprep.subr.bf16.mxu0 %v2822
    %2886 = vmatpush1.bf16.msra.mxu0 %v2821
    %2887 = vmatprep.subr.bf16.mxu0 %v2824
    %2888 = vmatpush1.bf16.msra.mxu0 %v2823
    %2889 = vmatprep.subr.bf16.mxu0 %v2826
    %2890 = vmatpush1.bf16.msra.mxu0 %v2825
    %2891 = vmatprep.subr.bf16.mxu0 %v2828
    %2892 = vmatpush1.bf16.msra.mxu0 %v2827
    %2893 = vmatprep.mubr.bf16.mxu0 %v250
    %2894 = vmatmul.mubr.bf16.gmra.mrb[0].mxu0 %v249
    %v2895 = vpop.f32.mrb[0].mxu0
    %v2896 = vadd.f32 %v2695, %v2895
    %v2897 = vpop.f32.mrb[0].mxu0
    %v2898 = vadd.f32 %v2697, %v2897
    %v2899 = vpop.f32.mrb[0].mxu0
    %v2900 = vpop.f32.mrb[0].mxu0
    %2901 = vdwg.mxu0
    %v2902 = vld [vmem:[#allocation16] sm:$0x3]
    %v2904 = vlaneseq
    %v2905 = vshrl.u32 %v2904, 7
    %v2906 = vsub.s32 0, %v2905
    %v2907 = vrot.slane %v2902, %v2906
    %v2908 = vlaneseq
    %v2909 = vshrl.u32 %v2908, 7
    %v2910 = vsub.s32 1, %v2909
    %v2911 = vrot.slane %v2902, %v2910
    %v2914 = vadd.f32 %v2896, %v2907
    %v2915 = vadd.f32 %v2898, %v2911
    %v2916 = vmax.f32 %v2914, 0.0
    %v2917 = vmax.f32 %v2915, 0.0
    %v2918 = vld [vmem:[#allocation17] sm:$0x3]
    %v2920 = vlaneseq
    %v2921 = vshrl.u32 %v2920, 7
    %v2922 = vsub.s32 0, %v2921
    %v2923 = vrot.slane %v2918, %v2922
    %v2924 = vlaneseq
    %v2925 = vshrl.u32 %v2924, 7
    %v2926 = vsub.s32 1, %v2925
    %v2927 = vrot.slane %v2918, %v2926
    %v2930 = vmul.f32 %v2916, %v2923
    %v2931 = vmul.f32 %v2917, %v2927
    %v2932 = vadd.f32 %v2930, %v2931
    %2933 = vadd.xlane.f32.xlu0 %v2932
    %v2934 = vpop.xlane.xlu0 %2933
    %v2935 = vld [vmem:[#allocation2] sm:$0x1]
    %v2937 = vlaneseq
    %v2938 = vshrl.u32 %v2937, 7
    %v2939 = vsub.s32 0, %v2938
    %v2940 = vrot.slane %v2935, %v2939
    %v2942 = vadd.f32 %v2934, %v2940
    %v2943 = vsub.f32 0.0, %v2942
    %v2944 = vmul.f32 %v2943, 1.442695
    %v2945 = vpow.pop %v2944
    %v2946 = vadd.f32 %v2945, 1.0
    %v2947 = vrcp.pop %v2946
    %v2948 = vmul.f32 1.0, %v2947
    %vm2949 = vcmask 7168
    %2950 = vst.msk [vmem:[%s11] sm:$0xff] %vm2949, %v2948
    // Predicated region
    $region86: #{tpu_custom_call.1} parent=1 // pred_check
      _
    $region87: #{tpu_custom_call.1} parent=1 // pred_check_branch
      %2952 = sbr.rel (0) target = $region89
    $region88: #{tpu_custom_call.1} parent=1 // pred_region
      _
    $region89: #{tpu_custom_call.1} parent=1 // pred_fallthru
      _
    // Predicated region
    $region90: #{tpu_custom_call.1} parent=1 // pred_check
      _
    $region91: #{tpu_custom_call.1} parent=1 // pred_check_branch
      %2954 = sbr.rel (0) target = $region93
    $region92: #{tpu_custom_call.1} parent=1 // pred_region
      _
    $region93: #{tpu_custom_call.1} parent=1 // pred_fallthru
      _
    %2955 = vsyncpa [#allocation4], 1
    %2956 = vsyncpa [#allocation6], 1
    %2957 = vsyncpa [#allocation9], 1
    %2958 = vsyncpa [#allocation12], 1
    %2959 = vsyncpa [#allocation15], 1
    %2960 = vsyncpa [#allocation18], 1

</llo_original>
